<compile_context>
chip_gen: v6e
topology: v6e:2x2x1
jax: 0.10.0
libtpu: 0.0.40
codegen_flags: <defaults>
</compile_context>

<pallas_src>
import functools

import jax
import jax.numpy as jnp
from jax.experimental import pallas as pl
from jax.experimental.pallas import tpu as pltpu


def _round_up(x, m):
    return ((x + m - 1) // m) * m


# ----------------------------------------------------------------------------
# Pallas kernel: fused embed + L-layer MLP, feature-major compute.
#   x_ref : (tile, raw_dim) f32 row block of the points
#   refs  : w0, b0, w1, b1, ..., wL, bL, o_ref
#           w_i (out_i, in_i) in matmul dtype (bf16 by default), b_i (out_i, 1) f32
#   o_ref : (tile, out_size) f32 row block of the output
# ----------------------------------------------------------------------------
def _mlp_kernel(x_ref, *refs, chunk, use_tanh, fuse_embed):
    o_ref = refs[-1]
    wb_refs = refs[:-1]
    n_layers = len(wb_refs) // 2
    mm_dtype = wb_refs[0].dtype                 # bf16 (default) or f32
    n_chunks = x_ref.shape[0] // chunk          # static

    def body(c, carry):
        start = pl.multiple_of(c * chunk, chunk)
        xb = x_ref[pl.ds(start, chunk), :]      # (chunk, raw_dim) f32
        h = jnp.transpose(xb)                   # (raw_dim, chunk): lane-dense

        if fuse_embed:
            # embed(x) = [x; sin(x); cos(x)] stacked on the feature (sublane)
            # axis -> ONE layer-0 dot instead of three K=2 partial dots.
            h = jnp.concatenate([h, jnp.sin(h), jnp.cos(h)], axis=0)

        for l in range(n_layers):
            w = wb_refs[2 * l][...]             # (out_l, in_l) mm_dtype
            b = wb_refs[2 * l + 1][...]         # (out_l, 1) f32
            h = jnp.dot(w, h.astype(mm_dtype),
                        preferred_element_type=jnp.float32) + b
            if l < n_layers - 1:
                h = jnp.maximum(h, 0.0)         # ReLU (f32, VPU)

        if use_tanh:
            h = jnp.tanh(h)                     # (out, chunk) f32, EUP

        # (out, chunk) -> (chunk, out) and store straight into the (N, out) slab.
        o_ref[pl.ds(start, chunk), :] = jnp.transpose(h).astype(o_ref.dtype)
        return carry

    jax.lax.fori_loop(0, n_chunks, body, 0)


def mlp_pallas(x, params, *, use_tanh=True, over_param=False,
               matmul_dtype=jnp.bfloat16, max_tile=4096, chunk=512,
               target_steps=8):
    """x: (N, raw_dim) points.  params: [(W (out,in), b (out,1)), ...] f32."""
    n, raw_dim = x.shape
    out_size = params[-1][0].shape[0]
    fuse_embed = not over_param
    in0 = params[0][0].shape[1]
    if fuse_embed:
        assert in0 == 3 * raw_dim, "embedder output dim mismatch"
    else:
        assert in0 == raw_dim

    # Row-tile selection: a multiple of `chunk`, aiming for ~target_steps grid
    # steps (>=2 so both v7x TensorCores get work), minimal overshoot, capped.
    # Ragged last block is fine: OOB reads are garbage-in-dead-lanes, OOB writes
    # are dropped by the pipelined output DMA -> no jnp.pad / slice copies.
    tile = _round_up(max(pl.cdiv(n, target_steps), 1), chunk)
    tile = max(chunk, min(tile, max_tile))
    grid = (pl.cdiv(n, tile),)

    # Weights cast ONCE to the matmul dtype; biases stay f32 and are (out, 1)
    # so they broadcast over the lane (point) axis in-kernel.
    fixed = lambda i: (0, 0)
    flat_args, flat_specs = [], []
    for (w, b) in params:
        wq = w.astype(matmul_dtype)
        flat_args += [wq, b.astype(jnp.float32)]
        flat_specs += [pl.BlockSpec(wq.shape, fixed),
                       pl.BlockSpec(b.shape, fixed)]

    kernel = functools.partial(_mlp_kernel, chunk=chunk, use_tanh=use_tanh,
                               fuse_embed=fuse_embed)

    return pl.pallas_call(
        kernel,
        out_shape=jax.ShapeDtypeStruct((n, out_size), jnp.float32),
        grid=grid,
        in_specs=[pl.BlockSpec((tile, raw_dim), lambda i: (i, 0))] + flat_specs,
        out_specs=pl.BlockSpec((tile, out_size), lambda i: (i, 0)),
        compiler_params=pltpu.CompilerParams(
            dimension_semantics=("parallel",),
            vmem_limit_bytes=32 * 1024 * 1024),
    )(x, *flat_args)


def mlp_forward(x, params, **kw):
    y = mlp_pallas(x, params, **kw)
    return (y, None)                           # matches torch module's (x, None)


# ----------------------------------------------------------------------------
# Parameter init: PyTorch nn.Linear layout (W: (out, in)), bias kept as (out, 1).
# ----------------------------------------------------------------------------
def init_params(key, in_size, hidden_neurons, out_size):
    sizes = [in_size] + list(hidden_neurons) + [out_size]
    params = []
    for i in range(len(sizes) - 1):
        fan_in, fan_out = sizes[i], sizes[i + 1]
        key, kw, kb = jax.random.split(key, 3)
        bound = 1.0 / (fan_in ** 0.5)
        w = jax.random.uniform(kw, (fan_out, fan_in), jnp.float32, -bound, bound)
        b = jax.random.uniform(kb, (fan_out, 1), jnp.float32, -bound, bound)
        params.append((w, b))
    return params


# Pure-JAX reference (row-major, same math as the torch module).
# matmul_dtype lets us build a quantization-aware reference for the bf16 path.
def ref_forward(x, params, *, use_tanh=True, over_param=False,
                matmul_dtype=jnp.float32):
    h = x
    if not over_param:
        h = jnp.concatenate([h, jnp.sin(h), jnp.cos(h)], axis=-1)
    n_layers = len(params)
    for l, (w, b) in enumerate(params):
        h = jnp.dot(h.astype(matmul_dtype), w.astype(matmul_dtype).T,
                    preferred_element_type=jnp.float32,
                    precision=jax.lax.Precision.HIGHEST) + b[:, 0]
        if l < n_layers - 1:
            h = jnp.maximum(h, 0.0)
    if use_tanh:
        h = jnp.tanh(h)
    return h


if __name__ == "__main__":
    # Module config: embedder output dim = 6 (2 + sin(2) + cos(2)),
    # two hidden layers of 32, out_size = 3.
    in_size = 6
    hidden_neurons = [32, 32]
    out_size = 3
    N = 3000          # not a multiple of the tile -> exercises the ragged last block

    key = jax.random.PRNGKey(0)
    key, kx = jax.random.split(key)
    x = jax.random.uniform(kx, (N, 2), jnp.float32, -1.0, 1.0)   # 2-D coords

    params = init_params(key, in_size, hidden_neurons, out_size)

    # References: pure f32, and a quantization-aware one mirroring the kernel's
    # bf16-operand / f32-accumulate policy.
    y_ref_f32 = ref_forward(x, params, use_tanh=True)
    y_ref_bf16 = ref_forward(x, params, use_tanh=True, matmul_dtype=jnp.bfloat16)

    # Default (fast) kernel: bf16 MXU operands, f32 accumulation and I/O.
    y, _ = mlp_forward(x, params, use_tanh=True)
    y = jax.block_until_ready(y)

    assert y.shape == (N, out_size)
    # Tight vs the quantization-aware reference (allow a few bf16-ulp rounding
    # flips from transcendental implementation differences).
    assert jnp.allclose(y, y_ref_bf16, atol=5e-3, rtol=5e-3), \
        "mismatch vs bf16-aware reference"
    # Loose vs the pure-f32 reference (bf16 operand rounding budget).
    assert jnp.allclose(y, y_ref_f32, atol=4e-2, rtol=4e-2), \
        "mismatch vs f32 reference"

    print("KERNEL_OK")
</pallas_src>

<mosaic_0001>
module attributes {stable_mosaic.version = 11 : i64} {
  func.func @_mlp_kernel(%arg0: i32, %arg1: memref<512x2xf32, #tpu.memory_space<vmem>>, %arg2: memref<32x6xbf16, #tpu.memory_space<vmem>>, %arg3: memref<32x1xf32, #tpu.memory_space<vmem>>, %arg4: memref<32x32xbf16, #tpu.memory_space<vmem>>, %arg5: memref<32x1xf32, #tpu.memory_space<vmem>>, %arg6: memref<3x32xbf16, #tpu.memory_space<vmem>>, %arg7: memref<3x1xf32, #tpu.memory_space<vmem>>, %arg8: memref<512x3xf32, #tpu.memory_space<vmem>>) attributes {dimension_semantics = [#tpu.dimension_semantics<parallel>], iteration_bounds = array<i64: 6>, scalar_prefetch = 0 : i64, scratch_operands = 0 : i64, tpu.core_type = #tpu.core_type<tc>, window_params = [{transform_indices = @transform_0, window_bounds = array<i64: 512, 2>}, {pipeline_mode = #tpu.pipeline_mode<synchronous>, transform_indices = @transform_1, window_bounds = array<i64: 32, 6>}, {pipeline_mode = #tpu.pipeline_mode<synchronous>, transform_indices = @transform_2, window_bounds = array<i64: 32, 1>}, {pipeline_mode = #tpu.pipeline_mode<synchronous>, transform_indices = @transform_3, window_bounds = array<i64: 32, 32>}, {pipeline_mode = #tpu.pipeline_mode<synchronous>, transform_indices = @transform_4, window_bounds = array<i64: 32, 1>}, {pipeline_mode = #tpu.pipeline_mode<synchronous>, transform_indices = @transform_5, window_bounds = array<i64: 3, 32>}, {pipeline_mode = #tpu.pipeline_mode<synchronous>, transform_indices = @transform_6, window_bounds = array<i64: 3, 1>}, {transform_indices = @transform_7, window_bounds = array<i64: 512, 3>}]} {
    %c0_i32 = arith.constant 0 : i32
    %c512_i32 = arith.constant 512 : i32
    %0 = arith.muli %c0_i32, %c512_i32 : i32
    %1 = tpu.assume_multiple %0, 512 : i32
    %2 = arith.index_cast %1 : i32 to index
    %c0 = arith.constant 0 : index
    %3 = vector.load %arg1[%2, %c0] : memref<512x2xf32, #tpu.memory_space<vmem>>, vector<512x2xf32>
    %4 = tpu.transpose %3, [1, 0] : vector<512x2xf32> -> vector<2x512xf32>
    %5 = math.sin %4 : vector<2x512xf32>
    %6 = math.cos %4 : vector<2x512xf32>
    %7 = tpu.concatenate %4, %5, %6 in 0 : vector<2x512xf32>, vector<2x512xf32>, vector<2x512xf32> -> vector<6x512xf32>
    %c0_0 = arith.constant 0 : index
    %c0_1 = arith.constant 0 : index
    %8 = vector.load %arg2[%c0_0, %c0_1] : memref<32x6xbf16, #tpu.memory_space<vmem>>, vector<32x6xbf16>
    %c0_2 = arith.constant 0 : index
    %c0_3 = arith.constant 0 : index
    %9 = vector.load %arg3[%c0_2, %c0_3] : memref<32x1xf32, #tpu.memory_space<vmem>>, vector<32x1xf32>
    %10 = arith.truncf %7 : vector<6x512xf32> to vector<6x512xbf16>
    %cst = arith.constant dense<0.000000e+00> : vector<32x512xf32>
    %11 = tpu.matmul %8, %10, %cst {dimension_numbers = #tpu.dot_dimension_numbers<[1], [0], [0], [1], [0, 0, 1, 1], [], []>} : vector<32x6xbf16>, vector<6x512xbf16>, vector<32x512xf32> -> vector<32x512xf32>
    %12 = vector.broadcast %9 : vector<32x1xf32> to vector<32x512xf32>
    %13 = arith.addf %11, %12 : vector<32x512xf32>
    %cst_4 = arith.constant 0.000000e+00 : f32
    %14 = vector.broadcast %cst_4 : f32 to vector<32x512xf32>
    %15 = arith.maximumf %13, %14 : vector<32x512xf32>
    %c0_5 = arith.constant 0 : index
    %c0_6 = arith.constant 0 : index
    %16 = vector.load %arg4[%c0_5, %c0_6] : memref<32x32xbf16, #tpu.memory_space<vmem>>, vector<32x32xbf16>
    %c0_7 = arith.constant 0 : index
    %c0_8 = arith.constant 0 : index
    %17 = vector.load %arg5[%c0_7, %c0_8] : memref<32x1xf32, #tpu.memory_space<vmem>>, vector<32x1xf32>
    %18 = arith.truncf %15 : vector<32x512xf32> to vector<32x512xbf16>
    %cst_9 = arith.constant dense<0.000000e+00> : vector<32x512xf32>
    %19 = tpu.matmul %16, %18, %cst_9 {dimension_numbers = #tpu.dot_dimension_numbers<[1], [0], [0], [1], [0, 0, 1, 1], [], []>} : vector<32x32xbf16>, vector<32x512xbf16>, vector<32x512xf32> -> vector<32x512xf32>
    %20 = vector.broadcast %17 : vector<32x1xf32> to vector<32x512xf32>
    %21 = arith.addf %19, %20 : vector<32x512xf32>
    %cst_10 = arith.constant 0.000000e+00 : f32
    %22 = vector.broadcast %cst_10 : f32 to vector<32x512xf32>
    %23 = arith.maximumf %21, %22 : vector<32x512xf32>
    %c0_11 = arith.constant 0 : index
    %c0_12 = arith.constant 0 : index
    %24 = vector.load %arg6[%c0_11, %c0_12] : memref<3x32xbf16, #tpu.memory_space<vmem>>, vector<3x32xbf16>
    %c0_13 = arith.constant 0 : index
    %c0_14 = arith.constant 0 : index
    %25 = vector.load %arg7[%c0_13, %c0_14] : memref<3x1xf32, #tpu.memory_space<vmem>>, vector<3x1xf32>
    %26 = arith.truncf %23 : vector<32x512xf32> to vector<32x512xbf16>
    %cst_15 = arith.constant dense<0.000000e+00> : vector<3x512xf32>
    %27 = tpu.matmul %24, %26, %cst_15 {dimension_numbers = #tpu.dot_dimension_numbers<[1], [0], [0], [1], [0, 0, 1, 1], [], []>} : vector<3x32xbf16>, vector<32x512xbf16>, vector<3x512xf32> -> vector<3x512xf32>
    %28 = vector.broadcast %25 : vector<3x1xf32> to vector<3x512xf32>
    %29 = arith.addf %27, %28 : vector<3x512xf32>
    %30 = math.tanh %29 : vector<3x512xf32>
    %31 = tpu.transpose %30, [1, 0] : vector<3x512xf32> -> vector<512x3xf32>
    %32 = arith.index_cast %1 : i32 to index
    %c0_16 = arith.constant 0 : index
    %33 = vector.load %arg8[%32, %c0_16] : memref<512x3xf32, #tpu.memory_space<vmem>>, vector<512x3xf32>
    tpu.vector_store %arg8[%32, %c0_16], %31 {strides = array<i32>} : memref<512x3xf32, #tpu.memory_space<vmem>>, vector<512x3xf32>,
    %c1_i32 = arith.constant 1 : i32
    return
  }
  func.func @transform_0(%arg0: i32) -> (i32, i32) {
    %c0_i32 = arith.constant 0 : i32
    %c0_i32_0 = arith.constant 0 : i32
    return %arg0, %c0_i32 : i32, i32
  }
  func.func @transform_1(%arg0: i32) -> (i32, i32) {
    %c0_i32 = arith.constant 0 : i32
    %c0_i32_0 = arith.constant 0 : i32
    %c0_i32_1 = arith.constant 0 : i32
    return %c0_i32, %c0_i32_0 : i32, i32
  }
  func.func @transform_2(%arg0: i32) -> (i32, i32) {
    %c0_i32 = arith.constant 0 : i32
    %c0_i32_0 = arith.constant 0 : i32
    %c0_i32_1 = arith.constant 0 : i32
    return %c0_i32, %c0_i32_0 : i32, i32
  }
  func.func @transform_3(%arg0: i32) -> (i32, i32) {
    %c0_i32 = arith.constant 0 : i32
    %c0_i32_0 = arith.constant 0 : i32
    %c0_i32_1 = arith.constant 0 : i32
    return %c0_i32, %c0_i32_0 : i32, i32
  }
  func.func @transform_4(%arg0: i32) -> (i32, i32) {
    %c0_i32 = arith.constant 0 : i32
    %c0_i32_0 = arith.constant 0 : i32
    %c0_i32_1 = arith.constant 0 : i32
    return %c0_i32, %c0_i32_0 : i32, i32
  }
  func.func @transform_5(%arg0: i32) -> (i32, i32) {
    %c0_i32 = arith.constant 0 : i32
    %c0_i32_0 = arith.constant 0 : i32
    %c0_i32_1 = arith.constant 0 : i32
    return %c0_i32, %c0_i32_0 : i32, i32
  }
  func.func @transform_6(%arg0: i32) -> (i32, i32) {
    %c0_i32 = arith.constant 0 : i32
    %c0_i32_0 = arith.constant 0 : i32
    %c0_i32_1 = arith.constant 0 : i32
    return %c0_i32, %c0_i32_0 : i32, i32
  }
  func.func @transform_7(%arg0: i32) -> (i32, i32) {
    %c0_i32 = arith.constant 0 : i32
    %c0_i32_0 = arith.constant 0 : i32
    return %arg0, %c0_i32 : i32, i32
  }
}

</mosaic_0001>

<llo_original>
// kernel: tpu_custom_call.1
$region0: #{tpu_custom_call.1}
  #allocation0 [shape = 'u32[]', space=smem, size = 0x4, offset = 0x4, fixed_abs, tag = 'smem constant byte address 0x4 - core index']
  #allocation1 [shape = 'u32[144,128]{1,0:T(1,128)}', space=vmem, size = 0x12000, scoped, tag = 'internal scratch']
  %s0 = inlined_call_operand.vmem [shape: f32[3000,2], index: 0, kind: input, shape index: {}]
  %s1 = inlined_call_operand.vmem [shape: bf16[32,6], index: 1, kind: input, shape index: {}]
  %s2 = inlined_call_operand.vmem [shape: f32[32,1], index: 2, kind: input, shape index: {}]
  %s3 = inlined_call_operand.vmem [shape: bf16[32,32], index: 3, kind: input, shape index: {}]
  %s4 = inlined_call_operand.vmem [shape: f32[32,1], index: 4, kind: input, shape index: {}]
  %s5 = inlined_call_operand.vmem [shape: bf16[3,32], index: 5, kind: input, shape index: {}]
  %s6 = inlined_call_operand.vmem [shape: f32[3,1], index: 6, kind: input, shape index: {}]
  %s7 = inlined_call_operand.vmem [shape: f32[3000,3], index: 7, kind: output, shape index: {}]
  %s8 = sld [smem:[#allocation0]]
  $region109: #{tpu_custom_call.1} parent=0
    _
  %s10 = ssub.s32 1, %s8
  %s11 = scalar_select 0, %s10, %s8
  $region1: #{tpu_custom_call.1} parent=0
    #allocation2 [shape = 'u8[524288]{0}', space=vmem, size = 0x80000, scoped, tag = 'output window, operand 0']
    loop: start=0, step=1, limit=8
    $region2: #{tpu_custom_call.1} parent=1 // loop_pre_header
      _
    $region3: #{tpu_custom_call.1} parent=1 // loop_header
      %s13 = sphi 0, %s17
      %p14 = scmp.ge.s32.totalorder %s13, 8
      %s23 = sphi 0, %s25
      %s26 = sphi 0, %s23
      %s27 = sphi 0, %s26
      %s43 = sphi 0, %s27
      %s47 = sphi 0, %s47
      %s49 = sphi 0, %s47
      %s50 = sphi 0, %s49
      %s64 = sphi 0, %s50
      %s68 = sphi 0, %s68
      %s70 = sphi 0, %s68
      %s71 = sphi 0, %s70
      %s85 = sphi 0, %s71
      %s89 = sphi 0, %s89
      %s91 = sphi 0, %s89
      %s92 = sphi 0, %s91
      %s106 = sphi 0, %s92
      %s110 = sphi 0, %s110
      %s112 = sphi 0, %s110
      %s113 = sphi 0, %s112
      %s127 = sphi 0, %s113
      %s131 = sphi 0, %s131
      %s133 = sphi 0, %s131
      %s134 = sphi 0, %s133
      %s148 = sphi 0, %s134
      %s152 = sphi 0, %s152
      %s154 = sphi 0, %s152
      %s155 = sphi 0, %s154
      %s169 = sphi 0, %s155
      %s175 = sphi 0, %s177
      %s178 = sphi 0, %s175
      %s179 = sphi 0, %s178
      %s195 = sphi 0, %s179
    $region4: #{tpu_custom_call.1} parent=1 // loop_header_branch
      %16 = sbr.rel (%p14) target = $region8
    $region5: #{tpu_custom_call.1} parent=1 // loop_body
      %s18 = ssub.s32 %s13, 1
      %s19 = ssub.s32 %s13, 2
      %s20 = sadd.s32 %s13, 1
      %s21 = ssub.s32 %s13, %s20
      %p22 = scmp.eq.s32.totalorder %s21, 0
      %s24 = sadd.s32 %s23, 1
      %s25 = scalar_select %p22, %s23, %s24
      %p28 = pneg %p22
      %p29 = scmp.eq.s32.totalorder %s13, 5
      %p30 = por %p28, %p29
      %p31 = scmp.ne.s32.totalorder %s23, %s26
      %p32 = scmp.eq.s32.totalorder %s13, 0
      %p33 = por %p31, %p32
      %p34 = scmp.ne.s32.totalorder %s23, %s26
      %p35 = scmp.eq.s32.totalorder %s18, 5
      %p36 = por %p34, %p35
      %p37 = scmp.ne.s32.totalorder %s26, %s27
      %p38 = scmp.eq.s32.totalorder %s18, 0
      %p39 = por %p37, %p38
      %p40 = scmp.ne.s32.totalorder %s26, %s27
      %p41 = scmp.eq.s32.totalorder %s19, 5
      %p42 = por %p40, %p41
      %p44 = scmp.ne.s32.totalorder %s27, %s43
      %p45 = scmp.eq.s32.totalorder %s19, 0
      %p46 = por %p44, %p45
      %s48 = sadd.s32 %s47, 1
      %p51 = scmp.eq.s32.totalorder %s13, 5
      %p52 = scmp.ne.s32.totalorder %s47, %s49
      %p53 = scmp.eq.s32.totalorder %s13, 0
      %p54 = por %p52, %p53
      %p55 = scmp.ne.s32.totalorder %s47, %s49
      %p56 = scmp.eq.s32.totalorder %s18, 5
      %p57 = por %p55, %p56
      %p58 = scmp.ne.s32.totalorder %s49, %s50
      %p59 = scmp.eq.s32.totalorder %s18, 0
      %p60 = por %p58, %p59
      %p61 = scmp.ne.s32.totalorder %s49, %s50
      %p62 = scmp.eq.s32.totalorder %s19, 5
      %p63 = por %p61, %p62
      %p65 = scmp.ne.s32.totalorder %s50, %s64
      %p66 = scmp.eq.s32.totalorder %s19, 0
      %p67 = por %p65, %p66
      %s69 = sadd.s32 %s68, 1
      %p72 = scmp.eq.s32.totalorder %s13, 5
      %p73 = scmp.ne.s32.totalorder %s68, %s70
      %p74 = scmp.eq.s32.totalorder %s13, 0
      %p75 = por %p73, %p74
      %p76 = scmp.ne.s32.totalorder %s68, %s70
      %p77 = scmp.eq.s32.totalorder %s18, 5
      %p78 = por %p76, %p77
      %p79 = scmp.ne.s32.totalorder %s70, %s71
      %p80 = scmp.eq.s32.totalorder %s18, 0
      %p81 = por %p79, %p80
      %p82 = scmp.ne.s32.totalorder %s70, %s71
      %p83 = scmp.eq.s32.totalorder %s19, 5
      %p84 = por %p82, %p83
      %p86 = scmp.ne.s32.totalorder %s71, %s85
      %p87 = scmp.eq.s32.totalorder %s19, 0
      %p88 = por %p86, %p87
      %s90 = sadd.s32 %s89, 1
      %p93 = scmp.eq.s32.totalorder %s13, 5
      %p94 = scmp.ne.s32.totalorder %s89, %s91
      %p95 = scmp.eq.s32.totalorder %s13, 0
      %p96 = por %p94, %p95
      %p97 = scmp.ne.s32.totalorder %s89, %s91
      %p98 = scmp.eq.s32.totalorder %s18, 5
      %p99 = por %p97, %p98
      %p100 = scmp.ne.s32.totalorder %s91, %s92
      %p101 = scmp.eq.s32.totalorder %s18, 0
      %p102 = por %p100, %p101
      %p103 = scmp.ne.s32.totalorder %s91, %s92
      %p104 = scmp.eq.s32.totalorder %s19, 5
      %p105 = por %p103, %p104
      %p107 = scmp.ne.s32.totalorder %s92, %s106
      %p108 = scmp.eq.s32.totalorder %s19, 0
      %p109 = por %p107, %p108
      %s111 = sadd.s32 %s110, 1
      %p114 = scmp.eq.s32.totalorder %s13, 5
      %p115 = scmp.ne.s32.totalorder %s110, %s112
      %p116 = scmp.eq.s32.totalorder %s13, 0
      %p117 = por %p115, %p116
      %p118 = scmp.ne.s32.totalorder %s110, %s112
      %p119 = scmp.eq.s32.totalorder %s18, 5
      %p120 = por %p118, %p119
      %p121 = scmp.ne.s32.totalorder %s112, %s113
      %p122 = scmp.eq.s32.totalorder %s18, 0
      %p123 = por %p121, %p122
      %p124 = scmp.ne.s32.totalorder %s112, %s113
      %p125 = scmp.eq.s32.totalorder %s19, 5
      %p126 = por %p124, %p125
      %p128 = scmp.ne.s32.totalorder %s113, %s127
      %p129 = scmp.eq.s32.totalorder %s19, 0
      %p130 = por %p128, %p129
      %s132 = sadd.s32 %s131, 1
      %p135 = scmp.eq.s32.totalorder %s13, 5
      %p136 = scmp.ne.s32.totalorder %s131, %s133
      %p137 = scmp.eq.s32.totalorder %s13, 0
      %p138 = por %p136, %p137
      %p139 = scmp.ne.s32.totalorder %s131, %s133
      %p140 = scmp.eq.s32.totalorder %s18, 5
      %p141 = por %p139, %p140
      %p142 = scmp.ne.s32.totalorder %s133, %s134
      %p143 = scmp.eq.s32.totalorder %s18, 0
      %p144 = por %p142, %p143
      %p145 = scmp.ne.s32.totalorder %s133, %s134
      %p146 = scmp.eq.s32.totalorder %s19, 5
      %p147 = por %p145, %p146
      %p149 = scmp.ne.s32.totalorder %s134, %s148
      %p150 = scmp.eq.s32.totalorder %s19, 0
      %p151 = por %p149, %p150
      %s153 = sadd.s32 %s152, 1
      %p156 = scmp.eq.s32.totalorder %s13, 5
      %p157 = scmp.ne.s32.totalorder %s152, %s154
      %p158 = scmp.eq.s32.totalorder %s13, 0
      %p159 = por %p157, %p158
      %p160 = scmp.ne.s32.totalorder %s152, %s154
      %p161 = scmp.eq.s32.totalorder %s18, 5
      %p162 = por %p160, %p161
      %p163 = scmp.ne.s32.totalorder %s154, %s155
      %p164 = scmp.eq.s32.totalorder %s18, 0
      %p165 = por %p163, %p164
      %p166 = scmp.ne.s32.totalorder %s154, %s155
      %p167 = scmp.eq.s32.totalorder %s19, 5
      %p168 = por %p166, %p167
      %p170 = scmp.ne.s32.totalorder %s155, %s169
      %p171 = scmp.eq.s32.totalorder %s19, 0
      %p172 = por %p170, %p171
      %s173 = ssub.s32 %s13, %s20
      %p174 = scmp.eq.s32.totalorder %s173, 0
      %s176 = sadd.s32 %s175, 1
      %s177 = scalar_select %p174, %s175, %s176
      %p180 = pneg %p174
      %p181 = scmp.eq.s32.totalorder %s13, 5
      %p182 = por %p180, %p181
      %p183 = scmp.ne.s32.totalorder %s175, %s178
      %p184 = scmp.eq.s32.totalorder %s13, 0
      %p185 = por %p183, %p184
      %p186 = scmp.ne.s32.totalorder %s175, %s178
      %p187 = scmp.eq.s32.totalorder %s18, 5
      %p188 = por %p186, %p187
      %p189 = scmp.ne.s32.totalorder %s178, %s179
      %p190 = scmp.eq.s32.totalorder %s18, 0
      %p191 = por %p189, %p190
      %p192 = scmp.ne.s32.totalorder %s178, %s179
      %p193 = scmp.eq.s32.totalorder %s19, 5
      %p194 = por %p192, %p193
      %p196 = scmp.ne.s32.totalorder %s179, %s195
      %p197 = scmp.eq.s32.totalorder %s19, 0
      %p198 = por %p196, %p197
      %p199 = scmp.le.s32.totalorder 1, %s13
      %p200 = scmp.lt.s32.totalorder %s13, 7
      %p201 = pnand %p199, %p200
      %p202 = pneg %p201
      // Predicated region
      $region9: #{tpu_custom_call.1} parent=5 // pred_check
        _
      $region10: #{tpu_custom_call.1} parent=5 // pred_check_branch
        %204 = sbr.rel (%p201) target = $region12
      $region11: #{tpu_custom_call.1} parent=5 // pred_region
        %s205 = ssub.s32 %s13, 1
        // Predicated region
        $region13: #{tpu_custom_call.1} parent=11 // pred_check
          %p206 = pneg %p60
        $region14: #{tpu_custom_call.1} parent=11 // pred_check_branch
          %208 = sbr.rel (%p206) target = $region16
        $region15: #{tpu_custom_call.1} parent=11 // pred_region
          _
        $region16: #{tpu_custom_call.1} parent=11 // pred_fallthru
          _
        // Predicated region
        $region17: #{tpu_custom_call.1} parent=11 // pred_check
          %p209 = pneg %p81
        $region18: #{tpu_custom_call.1} parent=11 // pred_check_branch
          %211 = sbr.rel (%p209) target = $region20
        $region19: #{tpu_custom_call.1} parent=11 // pred_region
          _
        $region20: #{tpu_custom_call.1} parent=11 // pred_fallthru
          _
        // Predicated region
        $region21: #{tpu_custom_call.1} parent=11 // pred_check
          %p212 = pneg %p102
        $region22: #{tpu_custom_call.1} parent=11 // pred_check_branch
          %214 = sbr.rel (%p212) target = $region24
        $region23: #{tpu_custom_call.1} parent=11 // pred_region
          _
        $region24: #{tpu_custom_call.1} parent=11 // pred_fallthru
          _
        // Predicated region
        $region25: #{tpu_custom_call.1} parent=11 // pred_check
          %p215 = pneg %p123
        $region26: #{tpu_custom_call.1} parent=11 // pred_check_branch
          %217 = sbr.rel (%p215) target = $region28
        $region27: #{tpu_custom_call.1} parent=11 // pred_region
          _
        $region28: #{tpu_custom_call.1} parent=11 // pred_fallthru
          _
        // Predicated region
        $region29: #{tpu_custom_call.1} parent=11 // pred_check
          %p218 = pneg %p144
        $region30: #{tpu_custom_call.1} parent=11 // pred_check_branch
          %220 = sbr.rel (%p218) target = $region32
        $region31: #{tpu_custom_call.1} parent=11 // pred_region
          _
        $region32: #{tpu_custom_call.1} parent=11 // pred_fallthru
          _
        // Predicated region
        $region33: #{tpu_custom_call.1} parent=11 // pred_check
          %p221 = pneg %p165
        $region34: #{tpu_custom_call.1} parent=11 // pred_check_branch
          %223 = sbr.rel (%p221) target = $region36
        $region35: #{tpu_custom_call.1} parent=11 // pred_region
          _
        $region36: #{tpu_custom_call.1} parent=11 // pred_fallthru
          _
      $region12: #{tpu_custom_call.1} parent=5 // pred_fallthru
        _
      %p224 = scmp.lt.s32.totalorder %s13, 6
      // Predicated region
      $region37: #{tpu_custom_call.1} parent=5 // pred_check
        %p225 = pneg %p224
      $region38: #{tpu_custom_call.1} parent=5 // pred_check_branch
        %227 = sbr.rel (%p225) target = $region40
      $region39: #{tpu_custom_call.1} parent=5 // pred_region
        // Predicated region
        $region41: #{tpu_custom_call.1} parent=39 // pred_check
          %p228 = pneg %p33
        $region42: #{tpu_custom_call.1} parent=39 // pred_check_branch
          %230 = sbr.rel (%p228) target = $region44
        $region43: #{tpu_custom_call.1} parent=39 // pred_region
          %s231 = smul.u32 64, %s13
          %s232 = ssub.s32 375, %s231
          %p233 = scmp.lt.s32.totalorder %s232, 64
          %s234 = scalar_select %p233, %s232, 64
          %s235 = smul.u32 128, %s234
          %p236 = scmp.lt.s32.totalorder %s231, 374
          %s237 = scalar_select %p236, %s231, 374
          %s238 = smul.addr %s237, 8
          %s239 = scalar_lea.vmem %s0, %s238
          %s240 = smul.u32 64, %s13
          %s241 = ssub.s32 375, %s240
          %p242 = scmp.lt.s32.totalorder %s241, 64
          %s243 = scalar_select %p242, %s241, 64
          %s244 = smul.u32 128, %s243
        $region44: #{tpu_custom_call.1} parent=39 // pred_fallthru
          _
      $region40: #{tpu_custom_call.1} parent=5 // pred_fallthru
        _
      %p245 = scmp.le.s32.totalorder 1, %s13
      %p246 = scmp.lt.s32.totalorder %s13, 7
      %p247 = pnand %p245, %p246
      %p248 = pneg %p247
      // Predicated region
      $region45: #{tpu_custom_call.1} parent=5 // pred_check
        _
      $region46: #{tpu_custom_call.1} parent=5 // pred_check_branch
        %250 = sbr.rel (%p247) target = $region48
      $region47: #{tpu_custom_call.1} parent=5 // pred_region
        %s251 = ssub.s32 %s13, 1
        %s252 = smul.u32 64, %s18
        %s253 = ssub.s32 375, %s252
        %p254 = scmp.lt.s32.totalorder %s253, 64
        %s255 = scalar_select %p254, %s253, 64
        %s256 = smul.u32 128, %s255
        %p257 = scmp.lt.s32.totalorder %s252, 374
        %s258 = scalar_select %p257, %s252, 374
        %s259 = smul.addr %s258, 8
        %s260 = scalar_lea.vmem %s0, %s259
        %p261 = pneg %p39
        %p262 = pneg %p36
        %p263 = pneg %p60
        %p264 = pneg %p57
        %p265 = pneg %p81
        %p266 = pneg %p78
        %p267 = pneg %p102
        %p268 = pneg %p99
        %p269 = pneg %p123
        %p270 = pneg %p120
        %p271 = pneg %p144
        %p272 = pneg %p141
        %p273 = pneg %p165
        %p274 = pneg %p162
        %p275 = pneg %p191
        %p276 = pneg %p188
        %s277 = sand.u32 %s178, 1
        %s278 = sand.u32 %s178, 1
        %s279 = smul.addr %s278, 512
        %s280 = scalar_lea.vmem [#allocation2], %s279
        %s281 = smul.u32 64, %s18
        %s282 = ssub.s32 375, %s281
        %p283 = scmp.lt.s32.totalorder %s282, 64
        %s284 = scalar_select %p283, %s282, 64
        %s285 = smul.u32 128, %s284
        %p286 = scmp.lt.s32.totalorder %s281, 374
        %s287 = scalar_select %p286, %s281, 374
        %s288 = smul.addr %s287, 8
        %s289 = scalar_lea.vmem %s0, %s288
        %s290 = smul.u32 64, %s18
        %s291 = ssub.s32 375, %s290
        %p292 = scmp.lt.s32.totalorder %s291, 64
        %s293 = scalar_select %p292, %s291, 64
        %s294 = smul.u32 128, %s293
        %s295 = smul.u32 64, %s18
        %s296 = ssub.s32 375, %s295
        %p297 = scmp.lt.s32.totalorder %s296, 64
        %s298 = scalar_select %p297, %s296, 64
        %s299 = smul.u32 128, %s298
        %v301 = vld [vmem:[%s289] sm:$0xff]
        %v302 = vld [vmem:[%s289 + $0x8] sm:$0xff]
        %v303 = vld [vmem:[%s289 + $0x10] sm:$0xff]
        %v304 = vld [vmem:[%s289 + $0x18] sm:$0xff]
        %v305 = vld [vmem:[%s289 + $0x20] sm:$0xff]
        %v306 = vld [vmem:[%s289 + $0x28] sm:$0xff]
        %v307 = vld [vmem:[%s289 + $0x30] sm:$0xff]
        %v308 = vld [vmem:[%s289 + $0x38] sm:$0xff]
        %v309 = vld [vmem:[%s289 + $0x40] sm:$0xff]
        %v310 = vld [vmem:[%s289 + $0x48] sm:$0xff]
        %v311 = vld [vmem:[%s289 + $0x50] sm:$0xff]
        %v312 = vld [vmem:[%s289 + $0x58] sm:$0xff]
        %v313 = vld [vmem:[%s289 + $0x60] sm:$0xff]
        %v314 = vld [vmem:[%s289 + $0x68] sm:$0xff]
        %v315 = vld [vmem:[%s289 + $0x70] sm:$0xff]
        %v316 = vld [vmem:[%s289 + $0x78] sm:$0xff]
        %v317 = vld [vmem:[%s289 + $0x80] sm:$0xff]
        %v318 = vld [vmem:[%s289 + $0x88] sm:$0xff]
        %v319 = vld [vmem:[%s289 + $0x90] sm:$0xff]
        %v320 = vld [vmem:[%s289 + $0x98] sm:$0xff]
        %v321 = vld [vmem:[%s289 + $0xa0] sm:$0xff]
        %v322 = vld [vmem:[%s289 + $0xa8] sm:$0xff]
        %v323 = vld [vmem:[%s289 + $0xb0] sm:$0xff]
        %v324 = vld [vmem:[%s289 + $0xb8] sm:$0xff]
        %v325 = vld [vmem:[%s289 + $0xc0] sm:$0xff]
        %v326 = vld [vmem:[%s289 + $0xc8] sm:$0xff]
        %v327 = vld [vmem:[%s289 + $0xd0] sm:$0xff]
        %v328 = vld [vmem:[%s289 + $0xd8] sm:$0xff]
        %v329 = vld [vmem:[%s289 + $0xe0] sm:$0xff]
        %v330 = vld [vmem:[%s289 + $0xe8] sm:$0xff]
        %v331 = vld [vmem:[%s289 + $0xf0] sm:$0xff]
        %v332 = vld [vmem:[%s289 + $0xf8] sm:$0xff]
        %v333 = vld [vmem:[%s289 + $0x100] sm:$0xff]
        %v334 = vld [vmem:[%s289 + $0x108] sm:$0xff]
        %v335 = vld [vmem:[%s289 + $0x110] sm:$0xff]
        %v336 = vld [vmem:[%s289 + $0x118] sm:$0xff]
        %v337 = vld [vmem:[%s289 + $0x120] sm:$0xff]
        %v338 = vld [vmem:[%s289 + $0x128] sm:$0xff]
        %v339 = vld [vmem:[%s289 + $0x130] sm:$0xff]
        %v340 = vld [vmem:[%s289 + $0x138] sm:$0xff]
        %v341 = vld [vmem:[%s289 + $0x140] sm:$0xff]
        %v342 = vld [vmem:[%s289 + $0x148] sm:$0xff]
        %v343 = vld [vmem:[%s289 + $0x150] sm:$0xff]
        %v344 = vld [vmem:[%s289 + $0x158] sm:$0xff]
        %v345 = vld [vmem:[%s289 + $0x160] sm:$0xff]
        %v346 = vld [vmem:[%s289 + $0x168] sm:$0xff]
        %v347 = vld [vmem:[%s289 + $0x170] sm:$0xff]
        %v348 = vld [vmem:[%s289 + $0x178] sm:$0xff]
        %v349 = vld [vmem:[%s289 + $0x180] sm:$0xff]
        %v350 = vld [vmem:[%s289 + $0x188] sm:$0xff]
        %v351 = vld [vmem:[%s289 + $0x190] sm:$0xff]
        %v352 = vld [vmem:[%s289 + $0x198] sm:$0xff]
        %v353 = vld [vmem:[%s289 + $0x1a0] sm:$0xff]
        %v354 = vld [vmem:[%s289 + $0x1a8] sm:$0xff]
        %v355 = vld [vmem:[%s289 + $0x1b0] sm:$0xff]
        %v356 = vld [vmem:[%s289 + $0x1b8] sm:$0xff]
        %v357 = vld [vmem:[%s289 + $0x1c0] sm:$0xff]
        %v358 = vld [vmem:[%s289 + $0x1c8] sm:$0xff]
        %v359 = vld [vmem:[%s289 + $0x1d0] sm:$0xff]
        %v360 = vld [vmem:[%s289 + $0x1d8] sm:$0xff]
        %v361 = vld [vmem:[%s289 + $0x1e0] sm:$0xff]
        %v362 = vld [vmem:[%s289 + $0x1e8] sm:$0xff]
        %v363 = vld [vmem:[%s289 + $0x1f0] sm:$0xff]
        %v364 = vld [vmem:[%s289 + $0x1f8] sm:$0xff]
        %365 = vxpose.xlu0.b32.start [1/16] %v301, 128
        %366 = vxpose.xlu0.b32.cont [2/16] %v302, 128
        %367 = vxpose.xlu0.b32.cont [3/16] %v303, 128
        %368 = vxpose.xlu0.b32.cont [4/16] %v304, 128
        %369 = vxpose.xlu0.b32.cont [5/16] %v305, 128
        %370 = vxpose.xlu0.b32.cont [6/16] %v306, 128
        %371 = vxpose.xlu0.b32.cont [7/16] %v307, 128
        %372 = vxpose.xlu0.b32.cont [8/16] %v308, 128
        %373 = vxpose.xlu0.b32.cont [9/16] %v309, 128
        %374 = vxpose.xlu0.b32.cont [10/16] %v310, 128
        %375 = vxpose.xlu0.b32.cont [11/16] %v311, 128
        %376 = vxpose.xlu0.b32.cont [12/16] %v312, 128
        %377 = vxpose.xlu0.b32.cont [13/16] %v313, 128
        %378 = vxpose.xlu0.b32.cont [14/16] %v314, 128
        %379 = vxpose.xlu0.b32.cont [15/16] %v315, 128
        %380 = vxpose.xlu0.b32.end [16/16] %v316, 128
        %v381 = vpop.trf.xlu0
        %v382 = vpop.trf.xlu0
        %v383 = vpop.trf.xlu0
        %v384 = vpop.trf.xlu0
        %v385 = vpop.trf.xlu0
        %v386 = vpop.trf.xlu0
        %v387 = vpop.trf.xlu0
        %v388 = vpop.trf.xlu0
        %v389 = vpop.trf.xlu0
        %v390 = vpop.trf.xlu0
        %v391 = vpop.trf.xlu0
        %v392 = vpop.trf.xlu0
        %v393 = vpop.trf.xlu0
        %v394 = vpop.trf.xlu0
        %v395 = vpop.trf.xlu0
        %v396 = vpop.trf.xlu0
        %397 = vxpose.xlu0.b32.start [1/16] %v317, 128
        %398 = vxpose.xlu0.b32.cont [2/16] %v318, 128
        %399 = vxpose.xlu0.b32.cont [3/16] %v319, 128
        %400 = vxpose.xlu0.b32.cont [4/16] %v320, 128
        %401 = vxpose.xlu0.b32.cont [5/16] %v321, 128
        %402 = vxpose.xlu0.b32.cont [6/16] %v322, 128
        %403 = vxpose.xlu0.b32.cont [7/16] %v323, 128
        %404 = vxpose.xlu0.b32.cont [8/16] %v324, 128
        %405 = vxpose.xlu0.b32.cont [9/16] %v325, 128
        %406 = vxpose.xlu0.b32.cont [10/16] %v326, 128
        %407 = vxpose.xlu0.b32.cont [11/16] %v327, 128
        %408 = vxpose.xlu0.b32.cont [12/16] %v328, 128
        %409 = vxpose.xlu0.b32.cont [13/16] %v329, 128
        %410 = vxpose.xlu0.b32.cont [14/16] %v330, 128
        %411 = vxpose.xlu0.b32.cont [15/16] %v331, 128
        %412 = vxpose.xlu0.b32.end [16/16] %v332, 128
        %v413 = vpop.trf.xlu0
        %v414 = vpop.trf.xlu0
        %v415 = vpop.trf.xlu0
        %v416 = vpop.trf.xlu0
        %v417 = vpop.trf.xlu0
        %v418 = vpop.trf.xlu0
        %v419 = vpop.trf.xlu0
        %v420 = vpop.trf.xlu0
        %v421 = vpop.trf.xlu0
        %v422 = vpop.trf.xlu0
        %v423 = vpop.trf.xlu0
        %v424 = vpop.trf.xlu0
        %v425 = vpop.trf.xlu0
        %v426 = vpop.trf.xlu0
        %v427 = vpop.trf.xlu0
        %v428 = vpop.trf.xlu0
        %429 = vxpose.xlu0.b32.start [1/16] %v333, 128
        %430 = vxpose.xlu0.b32.cont [2/16] %v334, 128
        %431 = vxpose.xlu0.b32.cont [3/16] %v335, 128
        %432 = vxpose.xlu0.b32.cont [4/16] %v336, 128
        %433 = vxpose.xlu0.b32.cont [5/16] %v337, 128
        %434 = vxpose.xlu0.b32.cont [6/16] %v338, 128
        %435 = vxpose.xlu0.b32.cont [7/16] %v339, 128
        %436 = vxpose.xlu0.b32.cont [8/16] %v340, 128
        %437 = vxpose.xlu0.b32.cont [9/16] %v341, 128
        %438 = vxpose.xlu0.b32.cont [10/16] %v342, 128
        %439 = vxpose.xlu0.b32.cont [11/16] %v343, 128
        %440 = vxpose.xlu0.b32.cont [12/16] %v344, 128
        %441 = vxpose.xlu0.b32.cont [13/16] %v345, 128
        %442 = vxpose.xlu0.b32.cont [14/16] %v346, 128
        %443 = vxpose.xlu0.b32.cont [15/16] %v347, 128
        %444 = vxpose.xlu0.b32.end [16/16] %v348, 128
        %v445 = vpop.trf.xlu0
        %v446 = vpop.trf.xlu0
        %v447 = vpop.trf.xlu0
        %v448 = vpop.trf.xlu0
        %v449 = vpop.trf.xlu0
        %v450 = vpop.trf.xlu0
        %v451 = vpop.trf.xlu0
        %v452 = vpop.trf.xlu0
        %v453 = vpop.trf.xlu0
        %v454 = vpop.trf.xlu0
        %v455 = vpop.trf.xlu0
        %v456 = vpop.trf.xlu0
        %v457 = vpop.trf.xlu0
        %v458 = vpop.trf.xlu0
        %v459 = vpop.trf.xlu0
        %v460 = vpop.trf.xlu0
        %461 = vxpose.xlu0.b32.start [1/16] %v349, 128
        %462 = vxpose.xlu0.b32.cont [2/16] %v350, 128
        %463 = vxpose.xlu0.b32.cont [3/16] %v351, 128
        %464 = vxpose.xlu0.b32.cont [4/16] %v352, 128
        %465 = vxpose.xlu0.b32.cont [5/16] %v353, 128
        %466 = vxpose.xlu0.b32.cont [6/16] %v354, 128
        %467 = vxpose.xlu0.b32.cont [7/16] %v355, 128
        %468 = vxpose.xlu0.b32.cont [8/16] %v356, 128
        %469 = vxpose.xlu0.b32.cont [9/16] %v357, 128
        %470 = vxpose.xlu0.b32.cont [10/16] %v358, 128
        %471 = vxpose.xlu0.b32.cont [11/16] %v359, 128
        %472 = vxpose.xlu0.b32.cont [12/16] %v360, 128
        %473 = vxpose.xlu0.b32.cont [13/16] %v361, 128
        %474 = vxpose.xlu0.b32.cont [14/16] %v362, 128
        %475 = vxpose.xlu0.b32.cont [15/16] %v363, 128
        %476 = vxpose.xlu0.b32.end [16/16] %v364, 128
        %v477 = vpop.trf.xlu0
        %v478 = vpop.trf.xlu0
        %v479 = vpop.trf.xlu0
        %v480 = vpop.trf.xlu0
        %v481 = vpop.trf.xlu0
        %v482 = vpop.trf.xlu0
        %v483 = vpop.trf.xlu0
        %v484 = vpop.trf.xlu0
        %v485 = vpop.trf.xlu0
        %v486 = vpop.trf.xlu0
        %v487 = vpop.trf.xlu0
        %v488 = vpop.trf.xlu0
        %v489 = vpop.trf.xlu0
        %v490 = vpop.trf.xlu0
        %v491 = vpop.trf.xlu0
        %v492 = vpop.trf.xlu0
        %v493 = vand.u32 2147483647, %v381
        %vm494 = vcmp.le.f32.partialorder %v493, 0.7853982
        %vm495 = vcmp.lt.s32.totalorder %v381, 0
        %v496 = vand.u32 %v381, 2139095040
        %v497 = vshrl.u32 %v496, 23
        %v498 = vsub.s32 %v497, 127
        %v499 = vand.u32 2147483647, %v381
        %v500 = vand.u32 %v499, 8388607
        %v501 = vor.u32 %v500, 8388608
        %v502 = vsub.s32 0, %v501
        %v503 = vadd.s32 %v498, 1
        %vm504 = vcmp.gt.s32.totalorder %v503, 0
        %v505 = vsel %vm504, %v503, 0
        %v506 = vshrl.u32 %v505, 5
        %v507 = vand.u32 %v505, 31
        %v508 = vsub.s32 32, %v507
        %v509 = vshrl.u32 683565275, %v508
        %v510 = vshll.u32 683565275, %v507
        %v511 = vshrl.u32 2475754826, %v508
        %v512 = vor.u32 %v510, %v511
        %v513 = vshll.u32 2475754826, %v507
        %v514 = vshrl.u32 2131351028, %v508
        %v515 = vor.u32 %v513, %v514
        %v516 = vshll.u32 2131351028, %v507
        %v517 = vshrl.u32 2102212464, %v508
        %v518 = vor.u32 %v516, %v517
        %v519 = vshll.u32 2102212464, %v507
        %v520 = vshrl.u32 920167782, %v508
        %v521 = vor.u32 %v519, %v520
        %v522 = vshll.u32 920167782, %v507
        %v523 = vshrl.u32 1326507024, %v508
        %v524 = vor.u32 %v522, %v523
        %vm525 = vcmp.lt.s32.totalorder %v506, 1
        %vm526 = vcmp.lt.s32.totalorder %v506, 2
        %vm527 = vcmp.lt.s32.totalorder %v506, 3
        %vm528 = vcmp.lt.s32.totalorder %v506, 4
        %v529 = vsel %vm525, %v509, %v512
        %v530 = vsel %vm528, %v518, 2102212464
        %v531 = vsel %vm527, %v515, %v530
        %v532 = vsel %vm526, %v529, %v531
        %v533 = vsel %vm525, %v512, %v515
        %v534 = vsel %vm528, %v521, 920167782
        %v535 = vsel %vm527, %v518, %v534
        %v536 = vsel %vm526, %v533, %v535
        %v537 = vsel %vm525, %v515, %v518
        %v538 = vsel %vm528, %v524, 1326507024
        %v539 = vsel %vm527, %v521, %v538
        %v540 = vsel %vm526, %v537, %v539
        %v541 = vshll.u32 %v501, 8
        %v542 = vmul.u32.u64.compose %v541, %v540
        %v543 = vextract.low.u32 %v542
        %v544 = vextract.high.u32 %v542
        %v545 = vmul.u32.u64.compose %v541, %v536
        %v546 = vextract.low.u32 %v545
        %v547 = vextract.high.u32 %v545
        %v548 = vmul.u32 %v541, %v532
        %v549 = vadd.s32 %v544, %v546
        %vm550 = vc.u32 %v544, %v546
        %v551 = vadd.s32 %v547, 1
        %v552 = vsel %vm550, %v551, %v547
        %v553 = vadd.s32 %v548, %v552
        %v554 = vadd.s32 %v553, 536870912
        %v555 = vshrl.u32 %v554, 30
        %v556 = vshll.u32 %v555, 30
        %v557 = vsub.s32 %v553, %v556
        %vm558 = vcmp.lt.s32.totalorder %v557, 0
        %v559 = vsub.s32 0, %v557
        %v560 = vsel %vm558, %v559, %v557
        %v561 = vclz %v560
        %v562 = vsub.s32 %v561, 2
        %vm563 = vcmp.gt.s32.totalorder 0, %v562
        %v564 = vsel %vm563, 0, %v562
        %v565 = vsub.s32 32, %v564
        %v566 = vshll.u32 %v557, %v564
        %v567 = vshrl.u32 %v549, %v565
        %v568 = vor.u32 %v566, %v567
        %v569 = vsub.s32 4294967266, %v564
        %v570 = vadd.s32 %v569, 127
        %v571 = vshll.u32 %v570, 23
        %v572 = vor.u32 4788187, %v571
        %v573 = vand.u32 2147483647, %v572
        %v575 = vcvt.s32.f32 %v568
        %v576 = vmul.f32 %v575, %v573
        %v577 = vxor.u32 %v576, 2147483648
        %v578 = vsel %vm495, %v577, %v576
        %v579 = vsub.s32 4, %v555
        %v580 = vsel %vm495, %v579, %v555
        %v581 = vsel %vm494, %v381, %v578
        %v582 = vsel %vm494, 0, %v580
        %v583 = vcosq.f32.pop %v581
        %v584 = vsinq.f32.pop %v581
        %vm585 = vweird.f32 %v381
        %v586 = vadd.s32 %v582, 3
        %v587 = vand.u32 %v586, 3
        %vm588 = vcmp.lt.s32.totalorder %v587, 2
        %vm589 = vcmp.eq.s32.totalorder %v587, 0
        %v590 = vxor.u32 %v584, 2147483648
        %v591 = vsel %vm589, %v583, %v590
        %vm592 = vcmp.eq.s32.totalorder %v587, 2
        %v593 = vxor.u32 %v583, 2147483648
        %v594 = vsel %vm592, %v593, %v584
        %v595 = vsel %vm588, %v591, %v594
        %v596 = vsel %vm585, nan, %v595
        %v597 = vand.u32 2147483647, %v413
        %vm598 = vcmp.le.f32.partialorder %v597, 0.7853982
        %vm599 = vcmp.lt.s32.totalorder %v413, 0
        %v600 = vand.u32 %v413, 2139095040
        %v601 = vshrl.u32 %v600, 23
        %v602 = vsub.s32 %v601, 127
        %v603 = vand.u32 2147483647, %v413
        %v604 = vand.u32 %v603, 8388607
        %v605 = vor.u32 %v604, 8388608
        %v606 = vsub.s32 0, %v605
        %v607 = vadd.s32 %v602, 1
        %vm608 = vcmp.gt.s32.totalorder %v607, 0
        %v609 = vsel %vm608, %v607, 0
        %v610 = vshrl.u32 %v609, 5
        %v611 = vand.u32 %v609, 31
        %v612 = vsub.s32 32, %v611
        %v613 = vshrl.u32 683565275, %v612
        %v614 = vshll.u32 683565275, %v611
        %v615 = vshrl.u32 2475754826, %v612
        %v616 = vor.u32 %v614, %v615
        %v617 = vshll.u32 2475754826, %v611
        %v618 = vshrl.u32 2131351028, %v612
        %v619 = vor.u32 %v617, %v618
        %v620 = vshll.u32 2131351028, %v611
        %v621 = vshrl.u32 2102212464, %v612
        %v622 = vor.u32 %v620, %v621
        %v623 = vshll.u32 2102212464, %v611
        %v624 = vshrl.u32 920167782, %v612
        %v625 = vor.u32 %v623, %v624
        %v626 = vshll.u32 920167782, %v611
        %v627 = vshrl.u32 1326507024, %v612
        %v628 = vor.u32 %v626, %v627
        %vm629 = vcmp.lt.s32.totalorder %v610, 1
        %vm630 = vcmp.lt.s32.totalorder %v610, 2
        %vm631 = vcmp.lt.s32.totalorder %v610, 3
        %vm632 = vcmp.lt.s32.totalorder %v610, 4
        %v633 = vsel %vm629, %v613, %v616
        %v634 = vsel %vm632, %v622, 2102212464
        %v635 = vsel %vm631, %v619, %v634
        %v636 = vsel %vm630, %v633, %v635
        %v637 = vsel %vm629, %v616, %v619
        %v638 = vsel %vm632, %v625, 920167782
        %v639 = vsel %vm631, %v622, %v638
        %v640 = vsel %vm630, %v637, %v639
        %v641 = vsel %vm629, %v619, %v622
        %v642 = vsel %vm632, %v628, 1326507024
        %v643 = vsel %vm631, %v625, %v642
        %v644 = vsel %vm630, %v641, %v643
        %v645 = vshll.u32 %v605, 8
        %v646 = vmul.u32.u64.compose %v645, %v644
        %v647 = vextract.low.u32 %v646
        %v648 = vextract.high.u32 %v646
        %v649 = vmul.u32.u64.compose %v645, %v640
        %v650 = vextract.low.u32 %v649
        %v651 = vextract.high.u32 %v649
        %v652 = vmul.u32 %v645, %v636
        %v653 = vadd.s32 %v648, %v650
        %vm654 = vc.u32 %v648, %v650
        %v655 = vadd.s32 %v651, 1
        %v656 = vsel %vm654, %v655, %v651
        %v657 = vadd.s32 %v652, %v656
        %v658 = vadd.s32 %v657, 536870912
        %v659 = vshrl.u32 %v658, 30
        %v660 = vshll.u32 %v659, 30
        %v661 = vsub.s32 %v657, %v660
        %vm662 = vcmp.lt.s32.totalorder %v661, 0
        %v663 = vsub.s32 0, %v661
        %v664 = vsel %vm662, %v663, %v661
        %v665 = vclz %v664
        %v666 = vsub.s32 %v665, 2
        %vm667 = vcmp.gt.s32.totalorder 0, %v666
        %v668 = vsel %vm667, 0, %v666
        %v669 = vsub.s32 32, %v668
        %v670 = vshll.u32 %v661, %v668
        %v671 = vshrl.u32 %v653, %v669
        %v672 = vor.u32 %v670, %v671
        %v673 = vsub.s32 4294967266, %v668
        %v674 = vadd.s32 %v673, 127
        %v675 = vshll.u32 %v674, 23
        %v676 = vor.u32 4788187, %v675
        %v677 = vand.u32 2147483647, %v676
        %v679 = vcvt.s32.f32 %v672
        %v680 = vmul.f32 %v679, %v677
        %v681 = vxor.u32 %v680, 2147483648
        %v682 = vsel %vm599, %v681, %v680
        %v683 = vsub.s32 4, %v659
        %v684 = vsel %vm599, %v683, %v659
        %v685 = vsel %vm598, %v413, %v682
        %v686 = vsel %vm598, 0, %v684
        %v687 = vcosq.f32.pop %v685
        %v688 = vsinq.f32.pop %v685
        %vm689 = vweird.f32 %v413
        %v690 = vadd.s32 %v686, 3
        %v691 = vand.u32 %v690, 3
        %vm692 = vcmp.lt.s32.totalorder %v691, 2
        %vm693 = vcmp.eq.s32.totalorder %v691, 0
        %v694 = vxor.u32 %v688, 2147483648
        %v695 = vsel %vm693, %v687, %v694
        %vm696 = vcmp.eq.s32.totalorder %v691, 2
        %v697 = vxor.u32 %v687, 2147483648
        %v698 = vsel %vm696, %v697, %v688
        %v699 = vsel %vm692, %v695, %v698
        %v700 = vsel %vm689, nan, %v699
        %v701 = vand.u32 2147483647, %v445
        %vm702 = vcmp.le.f32.partialorder %v701, 0.7853982
        %vm703 = vcmp.lt.s32.totalorder %v445, 0
        %v704 = vand.u32 %v445, 2139095040
        %v705 = vshrl.u32 %v704, 23
        %v706 = vsub.s32 %v705, 127
        %v707 = vand.u32 2147483647, %v445
        %v708 = vand.u32 %v707, 8388607
        %v709 = vor.u32 %v708, 8388608
        %v710 = vsub.s32 0, %v709
        %v711 = vadd.s32 %v706, 1
        %vm712 = vcmp.gt.s32.totalorder %v711, 0
        %v713 = vsel %vm712, %v711, 0
        %v714 = vshrl.u32 %v713, 5
        %v715 = vand.u32 %v713, 31
        %v716 = vsub.s32 32, %v715
        %v717 = vshrl.u32 683565275, %v716
        %v718 = vshll.u32 683565275, %v715
        %v719 = vshrl.u32 2475754826, %v716
        %v720 = vor.u32 %v718, %v719
        %v721 = vshll.u32 2475754826, %v715
        %v722 = vshrl.u32 2131351028, %v716
        %v723 = vor.u32 %v721, %v722
        %v724 = vshll.u32 2131351028, %v715
        %v725 = vshrl.u32 2102212464, %v716
        %v726 = vor.u32 %v724, %v725
        %v727 = vshll.u32 2102212464, %v715
        %v728 = vshrl.u32 920167782, %v716
        %v729 = vor.u32 %v727, %v728
        %v730 = vshll.u32 920167782, %v715
        %v731 = vshrl.u32 1326507024, %v716
        %v732 = vor.u32 %v730, %v731
        %vm733 = vcmp.lt.s32.totalorder %v714, 1
        %vm734 = vcmp.lt.s32.totalorder %v714, 2
        %vm735 = vcmp.lt.s32.totalorder %v714, 3
        %vm736 = vcmp.lt.s32.totalorder %v714, 4
        %v737 = vsel %vm733, %v717, %v720
        %v738 = vsel %vm736, %v726, 2102212464
        %v739 = vsel %vm735, %v723, %v738
        %v740 = vsel %vm734, %v737, %v739
        %v741 = vsel %vm733, %v720, %v723
        %v742 = vsel %vm736, %v729, 920167782
        %v743 = vsel %vm735, %v726, %v742
        %v744 = vsel %vm734, %v741, %v743
        %v745 = vsel %vm733, %v723, %v726
        %v746 = vsel %vm736, %v732, 1326507024
        %v747 = vsel %vm735, %v729, %v746
        %v748 = vsel %vm734, %v745, %v747
        %v749 = vshll.u32 %v709, 8
        %v750 = vmul.u32.u64.compose %v749, %v748
        %v751 = vextract.low.u32 %v750
        %v752 = vextract.high.u32 %v750
        %v753 = vmul.u32.u64.compose %v749, %v744
        %v754 = vextract.low.u32 %v753
        %v755 = vextract.high.u32 %v753
        %v756 = vmul.u32 %v749, %v740
        %v757 = vadd.s32 %v752, %v754
        %vm758 = vc.u32 %v752, %v754
        %v759 = vadd.s32 %v755, 1
        %v760 = vsel %vm758, %v759, %v755
        %v761 = vadd.s32 %v756, %v760
        %v762 = vadd.s32 %v761, 536870912
        %v763 = vshrl.u32 %v762, 30
        %v764 = vshll.u32 %v763, 30
        %v765 = vsub.s32 %v761, %v764
        %vm766 = vcmp.lt.s32.totalorder %v765, 0
        %v767 = vsub.s32 0, %v765
        %v768 = vsel %vm766, %v767, %v765
        %v769 = vclz %v768
        %v770 = vsub.s32 %v769, 2
        %vm771 = vcmp.gt.s32.totalorder 0, %v770
        %v772 = vsel %vm771, 0, %v770
        %v773 = vsub.s32 32, %v772
        %v774 = vshll.u32 %v765, %v772
        %v775 = vshrl.u32 %v757, %v773
        %v776 = vor.u32 %v774, %v775
        %v777 = vsub.s32 4294967266, %v772
        %v778 = vadd.s32 %v777, 127
        %v779 = vshll.u32 %v778, 23
        %v780 = vor.u32 4788187, %v779
        %v781 = vand.u32 2147483647, %v780
        %v783 = vcvt.s32.f32 %v776
        %v784 = vmul.f32 %v783, %v781
        %v785 = vxor.u32 %v784, 2147483648
        %v786 = vsel %vm703, %v785, %v784
        %v787 = vsub.s32 4, %v763
        %v788 = vsel %vm703, %v787, %v763
        %v789 = vsel %vm702, %v445, %v786
        %v790 = vsel %vm702, 0, %v788
        %v791 = vcosq.f32.pop %v789
        %v792 = vsinq.f32.pop %v789
        %vm793 = vweird.f32 %v445
        %v794 = vadd.s32 %v790, 3
        %v795 = vand.u32 %v794, 3
        %vm796 = vcmp.lt.s32.totalorder %v795, 2
        %vm797 = vcmp.eq.s32.totalorder %v795, 0
        %v798 = vxor.u32 %v792, 2147483648
        %v799 = vsel %vm797, %v791, %v798
        %vm800 = vcmp.eq.s32.totalorder %v795, 2
        %v801 = vxor.u32 %v791, 2147483648
        %v802 = vsel %vm800, %v801, %v792
        %v803 = vsel %vm796, %v799, %v802
        %v804 = vsel %vm793, nan, %v803
        %v805 = vand.u32 2147483647, %v477
        %vm806 = vcmp.le.f32.partialorder %v805, 0.7853982
        %vm807 = vcmp.lt.s32.totalorder %v477, 0
        %v808 = vand.u32 %v477, 2139095040
        %v809 = vshrl.u32 %v808, 23
        %v810 = vsub.s32 %v809, 127
        %v811 = vand.u32 2147483647, %v477
        %v812 = vand.u32 %v811, 8388607
        %v813 = vor.u32 %v812, 8388608
        %v814 = vsub.s32 0, %v813
        %v815 = vadd.s32 %v810, 1
        %vm816 = vcmp.gt.s32.totalorder %v815, 0
        %v817 = vsel %vm816, %v815, 0
        %v818 = vshrl.u32 %v817, 5
        %v819 = vand.u32 %v817, 31
        %v820 = vsub.s32 32, %v819
        %v821 = vshrl.u32 683565275, %v820
        %v822 = vshll.u32 683565275, %v819
        %v823 = vshrl.u32 2475754826, %v820
        %v824 = vor.u32 %v822, %v823
        %v825 = vshll.u32 2475754826, %v819
        %v826 = vshrl.u32 2131351028, %v820
        %v827 = vor.u32 %v825, %v826
        %v828 = vshll.u32 2131351028, %v819
        %v829 = vshrl.u32 2102212464, %v820
        %v830 = vor.u32 %v828, %v829
        %v831 = vshll.u32 2102212464, %v819
        %v832 = vshrl.u32 920167782, %v820
        %v833 = vor.u32 %v831, %v832
        %v834 = vshll.u32 920167782, %v819
        %v835 = vshrl.u32 1326507024, %v820
        %v836 = vor.u32 %v834, %v835
        %vm837 = vcmp.lt.s32.totalorder %v818, 1
        %vm838 = vcmp.lt.s32.totalorder %v818, 2
        %vm839 = vcmp.lt.s32.totalorder %v818, 3
        %vm840 = vcmp.lt.s32.totalorder %v818, 4
        %v841 = vsel %vm837, %v821, %v824
        %v842 = vsel %vm840, %v830, 2102212464
        %v843 = vsel %vm839, %v827, %v842
        %v844 = vsel %vm838, %v841, %v843
        %v845 = vsel %vm837, %v824, %v827
        %v846 = vsel %vm840, %v833, 920167782
        %v847 = vsel %vm839, %v830, %v846
        %v848 = vsel %vm838, %v845, %v847
        %v849 = vsel %vm837, %v827, %v830
        %v850 = vsel %vm840, %v836, 1326507024
        %v851 = vsel %vm839, %v833, %v850
        %v852 = vsel %vm838, %v849, %v851
        %v853 = vshll.u32 %v813, 8
        %v854 = vmul.u32.u64.compose %v853, %v852
        %v855 = vextract.low.u32 %v854
        %v856 = vextract.high.u32 %v854
        %v857 = vmul.u32.u64.compose %v853, %v848
        %v858 = vextract.low.u32 %v857
        %v859 = vextract.high.u32 %v857
        %v860 = vmul.u32 %v853, %v844
        %v861 = vadd.s32 %v856, %v858
        %vm862 = vc.u32 %v856, %v858
        %v863 = vadd.s32 %v859, 1
        %v864 = vsel %vm862, %v863, %v859
        %v865 = vadd.s32 %v860, %v864
        %v866 = vadd.s32 %v865, 536870912
        %v867 = vshrl.u32 %v866, 30
        %v868 = vshll.u32 %v867, 30
        %v869 = vsub.s32 %v865, %v868
        %vm870 = vcmp.lt.s32.totalorder %v869, 0
        %v871 = vsub.s32 0, %v869
        %v872 = vsel %vm870, %v871, %v869
        %v873 = vclz %v872
        %v874 = vsub.s32 %v873, 2
        %vm875 = vcmp.gt.s32.totalorder 0, %v874
        %v876 = vsel %vm875, 0, %v874
        %v877 = vsub.s32 32, %v876
        %v878 = vshll.u32 %v869, %v876
        %v879 = vshrl.u32 %v861, %v877
        %v880 = vor.u32 %v878, %v879
        %v881 = vsub.s32 4294967266, %v876
        %v882 = vadd.s32 %v881, 127
        %v883 = vshll.u32 %v882, 23
        %v884 = vor.u32 4788187, %v883
        %v885 = vand.u32 2147483647, %v884
        %v887 = vcvt.s32.f32 %v880
        %v888 = vmul.f32 %v887, %v885
        %v889 = vxor.u32 %v888, 2147483648
        %v890 = vsel %vm807, %v889, %v888
        %v891 = vsub.s32 4, %v867
        %v892 = vsel %vm807, %v891, %v867
        %v893 = vsel %vm806, %v477, %v890
        %v894 = vsel %vm806, 0, %v892
        %v895 = vcosq.f32.pop %v893
        %v896 = vsinq.f32.pop %v893
        %vm897 = vweird.f32 %v477
        %v898 = vadd.s32 %v894, 3
        %v899 = vand.u32 %v898, 3
        %vm900 = vcmp.lt.s32.totalorder %v899, 2
        %vm901 = vcmp.eq.s32.totalorder %v899, 0
        %v902 = vxor.u32 %v896, 2147483648
        %v903 = vsel %vm901, %v895, %v902
        %vm904 = vcmp.eq.s32.totalorder %v899, 2
        %v905 = vxor.u32 %v895, 2147483648
        %v906 = vsel %vm904, %v905, %v896
        %v907 = vsel %vm900, %v903, %v906
        %v908 = vsel %vm897, nan, %v907
        %v909 = vand.u32 2147483647, %v381
        %vm910 = vcmp.le.f32.partialorder %v909, 0.7853982
        %vm911 = vcmp.lt.s32.totalorder %v381, 0
        %v912 = vand.u32 %v381, 2139095040
        %v913 = vshrl.u32 %v912, 23
        %v914 = vsub.s32 %v913, 127
        %v915 = vand.u32 2147483647, %v381
        %v916 = vand.u32 %v915, 8388607
        %v917 = vor.u32 %v916, 8388608
        %v918 = vsub.s32 0, %v917
        %v919 = vadd.s32 %v914, 1
        %vm920 = vcmp.gt.s32.totalorder %v919, 0
        %v921 = vsel %vm920, %v919, 0
        %v922 = vshrl.u32 %v921, 5
        %v923 = vand.u32 %v921, 31
        %v924 = vsub.s32 32, %v923
        %v925 = vshrl.u32 683565275, %v924
        %v926 = vshll.u32 683565275, %v923
        %v927 = vshrl.u32 2475754826, %v924
        %v928 = vor.u32 %v926, %v927
        %v929 = vshll.u32 2475754826, %v923
        %v930 = vshrl.u32 2131351028, %v924
        %v931 = vor.u32 %v929, %v930
        %v932 = vshll.u32 2131351028, %v923
        %v933 = vshrl.u32 2102212464, %v924
        %v934 = vor.u32 %v932, %v933
        %v935 = vshll.u32 2102212464, %v923
        %v936 = vshrl.u32 920167782, %v924
        %v937 = vor.u32 %v935, %v936
        %v938 = vshll.u32 920167782, %v923
        %v939 = vshrl.u32 1326507024, %v924
        %v940 = vor.u32 %v938, %v939
        %vm941 = vcmp.lt.s32.totalorder %v922, 1
        %vm942 = vcmp.lt.s32.totalorder %v922, 2
        %vm943 = vcmp.lt.s32.totalorder %v922, 3
        %vm944 = vcmp.lt.s32.totalorder %v922, 4
        %v945 = vsel %vm941, %v925, %v928
        %v946 = vsel %vm944, %v934, 2102212464
        %v947 = vsel %vm943, %v931, %v946
        %v948 = vsel %vm942, %v945, %v947
        %v949 = vsel %vm941, %v928, %v931
        %v950 = vsel %vm944, %v937, 920167782
        %v951 = vsel %vm943, %v934, %v950
        %v952 = vsel %vm942, %v949, %v951
        %v953 = vsel %vm941, %v931, %v934
        %v954 = vsel %vm944, %v940, 1326507024
        %v955 = vsel %vm943, %v937, %v954
        %v956 = vsel %vm942, %v953, %v955
        %v957 = vshll.u32 %v917, 8
        %v958 = vmul.u32.u64.compose %v957, %v956
        %v959 = vextract.low.u32 %v958
        %v960 = vextract.high.u32 %v958
        %v961 = vmul.u32.u64.compose %v957, %v952
        %v962 = vextract.low.u32 %v961
        %v963 = vextract.high.u32 %v961
        %v964 = vmul.u32 %v957, %v948
        %v965 = vadd.s32 %v960, %v962
        %vm966 = vc.u32 %v960, %v962
        %v967 = vadd.s32 %v963, 1
        %v968 = vsel %vm966, %v967, %v963
        %v969 = vadd.s32 %v964, %v968
        %v970 = vadd.s32 %v969, 536870912
        %v971 = vshrl.u32 %v970, 30
        %v972 = vshll.u32 %v971, 30
        %v973 = vsub.s32 %v969, %v972
        %vm974 = vcmp.lt.s32.totalorder %v973, 0
        %v975 = vsub.s32 0, %v973
        %v976 = vsel %vm974, %v975, %v973
        %v977 = vclz %v976
        %v978 = vsub.s32 %v977, 2
        %vm979 = vcmp.gt.s32.totalorder 0, %v978
        %v980 = vsel %vm979, 0, %v978
        %v981 = vsub.s32 32, %v980
        %v982 = vshll.u32 %v973, %v980
        %v983 = vshrl.u32 %v965, %v981
        %v984 = vor.u32 %v982, %v983
        %v985 = vsub.s32 4294967266, %v980
        %v986 = vadd.s32 %v985, 127
        %v987 = vshll.u32 %v986, 23
        %v988 = vor.u32 4788187, %v987
        %v989 = vand.u32 2147483647, %v988
        %v991 = vcvt.s32.f32 %v984
        %v992 = vmul.f32 %v991, %v989
        %v993 = vxor.u32 %v992, 2147483648
        %v994 = vsel %vm911, %v993, %v992
        %v995 = vsub.s32 4, %v971
        %v996 = vsel %vm911, %v995, %v971
        %v997 = vsel %vm910, %v381, %v994
        %v998 = vsel %vm910, 0, %v996
        %v999 = vcosq.f32.pop %v997
        %v1000 = vsinq.f32.pop %v997
        %vm1001 = vweird.f32 %v381
        %v1002 = vand.u32 %v998, 3
        %vm1003 = vcmp.lt.s32.totalorder %v1002, 2
        %vm1004 = vcmp.eq.s32.totalorder %v1002, 0
        %v1005 = vxor.u32 %v1000, 2147483648
        %v1006 = vsel %vm1004, %v999, %v1005
        %vm1007 = vcmp.eq.s32.totalorder %v1002, 2
        %v1008 = vxor.u32 %v999, 2147483648
        %v1009 = vsel %vm1007, %v1008, %v1000
        %v1010 = vsel %vm1003, %v1006, %v1009
        %v1011 = vsel %vm1001, nan, %v1010
        %v1012 = vand.u32 2147483647, %v413
        %vm1013 = vcmp.le.f32.partialorder %v1012, 0.7853982
        %vm1014 = vcmp.lt.s32.totalorder %v413, 0
        %v1015 = vand.u32 %v413, 2139095040
        %v1016 = vshrl.u32 %v1015, 23
        %v1017 = vsub.s32 %v1016, 127
        %v1018 = vand.u32 2147483647, %v413
        %v1019 = vand.u32 %v1018, 8388607
        %v1020 = vor.u32 %v1019, 8388608
        %v1021 = vsub.s32 0, %v1020
        %v1022 = vadd.s32 %v1017, 1
        %vm1023 = vcmp.gt.s32.totalorder %v1022, 0
        %v1024 = vsel %vm1023, %v1022, 0
        %v1025 = vshrl.u32 %v1024, 5
        %v1026 = vand.u32 %v1024, 31
        %v1027 = vsub.s32 32, %v1026
        %v1028 = vshrl.u32 683565275, %v1027
        %v1029 = vshll.u32 683565275, %v1026
        %v1030 = vshrl.u32 2475754826, %v1027
        %v1031 = vor.u32 %v1029, %v1030
        %v1032 = vshll.u32 2475754826, %v1026
        %v1033 = vshrl.u32 2131351028, %v1027
        %v1034 = vor.u32 %v1032, %v1033
        %v1035 = vshll.u32 2131351028, %v1026
        %v1036 = vshrl.u32 2102212464, %v1027
        %v1037 = vor.u32 %v1035, %v1036
        %v1038 = vshll.u32 2102212464, %v1026
        %v1039 = vshrl.u32 920167782, %v1027
        %v1040 = vor.u32 %v1038, %v1039
        %v1041 = vshll.u32 920167782, %v1026
        %v1042 = vshrl.u32 1326507024, %v1027
        %v1043 = vor.u32 %v1041, %v1042
        %vm1044 = vcmp.lt.s32.totalorder %v1025, 1
        %vm1045 = vcmp.lt.s32.totalorder %v1025, 2
        %vm1046 = vcmp.lt.s32.totalorder %v1025, 3
        %vm1047 = vcmp.lt.s32.totalorder %v1025, 4
        %v1048 = vsel %vm1044, %v1028, %v1031
        %v1049 = vsel %vm1047, %v1037, 2102212464
        %v1050 = vsel %vm1046, %v1034, %v1049
        %v1051 = vsel %vm1045, %v1048, %v1050
        %v1052 = vsel %vm1044, %v1031, %v1034
        %v1053 = vsel %vm1047, %v1040, 920167782
        %v1054 = vsel %vm1046, %v1037, %v1053
        %v1055 = vsel %vm1045, %v1052, %v1054
        %v1056 = vsel %vm1044, %v1034, %v1037
        %v1057 = vsel %vm1047, %v1043, 1326507024
        %v1058 = vsel %vm1046, %v1040, %v1057
        %v1059 = vsel %vm1045, %v1056, %v1058
        %v1060 = vshll.u32 %v1020, 8
        %v1061 = vmul.u32.u64.compose %v1060, %v1059
        %v1062 = vextract.low.u32 %v1061
        %v1063 = vextract.high.u32 %v1061
        %v1064 = vmul.u32.u64.compose %v1060, %v1055
        %v1065 = vextract.low.u32 %v1064
        %v1066 = vextract.high.u32 %v1064
        %v1067 = vmul.u32 %v1060, %v1051
        %v1068 = vadd.s32 %v1063, %v1065
        %vm1069 = vc.u32 %v1063, %v1065
        %v1070 = vadd.s32 %v1066, 1
        %v1071 = vsel %vm1069, %v1070, %v1066
        %v1072 = vadd.s32 %v1067, %v1071
        %v1073 = vadd.s32 %v1072, 536870912
        %v1074 = vshrl.u32 %v1073, 30
        %v1075 = vshll.u32 %v1074, 30
        %v1076 = vsub.s32 %v1072, %v1075
        %vm1077 = vcmp.lt.s32.totalorder %v1076, 0
        %v1078 = vsub.s32 0, %v1076
        %v1079 = vsel %vm1077, %v1078, %v1076
        %v1080 = vclz %v1079
        %v1081 = vsub.s32 %v1080, 2
        %vm1082 = vcmp.gt.s32.totalorder 0, %v1081
        %v1083 = vsel %vm1082, 0, %v1081
        %v1084 = vsub.s32 32, %v1083
        %v1085 = vshll.u32 %v1076, %v1083
        %v1086 = vshrl.u32 %v1068, %v1084
        %v1087 = vor.u32 %v1085, %v1086
        %v1088 = vsub.s32 4294967266, %v1083
        %v1089 = vadd.s32 %v1088, 127
        %v1090 = vshll.u32 %v1089, 23
        %v1091 = vor.u32 4788187, %v1090
        %v1092 = vand.u32 2147483647, %v1091
        %v1094 = vcvt.s32.f32 %v1087
        %v1095 = vmul.f32 %v1094, %v1092
        %v1096 = vxor.u32 %v1095, 2147483648
        %v1097 = vsel %vm1014, %v1096, %v1095
        %v1098 = vsub.s32 4, %v1074
        %v1099 = vsel %vm1014, %v1098, %v1074
        %v1100 = vsel %vm1013, %v413, %v1097
        %v1101 = vsel %vm1013, 0, %v1099
        %v1102 = vcosq.f32.pop %v1100
        %v1103 = vsinq.f32.pop %v1100
        %vm1104 = vweird.f32 %v413
        %v1105 = vand.u32 %v1101, 3
        %vm1106 = vcmp.lt.s32.totalorder %v1105, 2
        %vm1107 = vcmp.eq.s32.totalorder %v1105, 0
        %v1108 = vxor.u32 %v1103, 2147483648
        %v1109 = vsel %vm1107, %v1102, %v1108
        %vm1110 = vcmp.eq.s32.totalorder %v1105, 2
        %v1111 = vxor.u32 %v1102, 2147483648
        %v1112 = vsel %vm1110, %v1111, %v1103
        %v1113 = vsel %vm1106, %v1109, %v1112
        %v1114 = vsel %vm1104, nan, %v1113
        %v1115 = vand.u32 2147483647, %v445
        %vm1116 = vcmp.le.f32.partialorder %v1115, 0.7853982
        %vm1117 = vcmp.lt.s32.totalorder %v445, 0
        %v1118 = vand.u32 %v445, 2139095040
        %v1119 = vshrl.u32 %v1118, 23
        %v1120 = vsub.s32 %v1119, 127
        %v1121 = vand.u32 2147483647, %v445
        %v1122 = vand.u32 %v1121, 8388607
        %v1123 = vor.u32 %v1122, 8388608
        %v1124 = vsub.s32 0, %v1123
        %v1125 = vadd.s32 %v1120, 1
        %vm1126 = vcmp.gt.s32.totalorder %v1125, 0
        %v1127 = vsel %vm1126, %v1125, 0
        %v1128 = vshrl.u32 %v1127, 5
        %v1129 = vand.u32 %v1127, 31
        %v1130 = vsub.s32 32, %v1129
        %v1131 = vshrl.u32 683565275, %v1130
        %v1132 = vshll.u32 683565275, %v1129
        %v1133 = vshrl.u32 2475754826, %v1130
        %v1134 = vor.u32 %v1132, %v1133
        %v1135 = vshll.u32 2475754826, %v1129
        %v1136 = vshrl.u32 2131351028, %v1130
        %v1137 = vor.u32 %v1135, %v1136
        %v1138 = vshll.u32 2131351028, %v1129
        %v1139 = vshrl.u32 2102212464, %v1130
        %v1140 = vor.u32 %v1138, %v1139
        %v1141 = vshll.u32 2102212464, %v1129
        %v1142 = vshrl.u32 920167782, %v1130
        %v1143 = vor.u32 %v1141, %v1142
        %v1144 = vshll.u32 920167782, %v1129
        %v1145 = vshrl.u32 1326507024, %v1130
        %v1146 = vor.u32 %v1144, %v1145
        %vm1147 = vcmp.lt.s32.totalorder %v1128, 1
        %vm1148 = vcmp.lt.s32.totalorder %v1128, 2
        %vm1149 = vcmp.lt.s32.totalorder %v1128, 3
        %vm1150 = vcmp.lt.s32.totalorder %v1128, 4
        %v1151 = vsel %vm1147, %v1131, %v1134
        %v1152 = vsel %vm1150, %v1140, 2102212464
        %v1153 = vsel %vm1149, %v1137, %v1152
        %v1154 = vsel %vm1148, %v1151, %v1153
        %v1155 = vsel %vm1147, %v1134, %v1137
        %v1156 = vsel %vm1150, %v1143, 920167782
        %v1157 = vsel %vm1149, %v1140, %v1156
        %v1158 = vsel %vm1148, %v1155, %v1157
        %v1159 = vsel %vm1147, %v1137, %v1140
        %v1160 = vsel %vm1150, %v1146, 1326507024
        %v1161 = vsel %vm1149, %v1143, %v1160
        %v1162 = vsel %vm1148, %v1159, %v1161
        %v1163 = vshll.u32 %v1123, 8
        %v1164 = vmul.u32.u64.compose %v1163, %v1162
        %v1165 = vextract.low.u32 %v1164
        %v1166 = vextract.high.u32 %v1164
        %v1167 = vmul.u32.u64.compose %v1163, %v1158
        %v1168 = vextract.low.u32 %v1167
        %v1169 = vextract.high.u32 %v1167
        %v1170 = vmul.u32 %v1163, %v1154
        %v1171 = vadd.s32 %v1166, %v1168
        %vm1172 = vc.u32 %v1166, %v1168
        %v1173 = vadd.s32 %v1169, 1
        %v1174 = vsel %vm1172, %v1173, %v1169
        %v1175 = vadd.s32 %v1170, %v1174
        %v1176 = vadd.s32 %v1175, 536870912
        %v1177 = vshrl.u32 %v1176, 30
        %v1178 = vshll.u32 %v1177, 30
        %v1179 = vsub.s32 %v1175, %v1178
        %vm1180 = vcmp.lt.s32.totalorder %v1179, 0
        %v1181 = vsub.s32 0, %v1179
        %v1182 = vsel %vm1180, %v1181, %v1179
        %v1183 = vclz %v1182
        %v1184 = vsub.s32 %v1183, 2
        %vm1185 = vcmp.gt.s32.totalorder 0, %v1184
        %v1186 = vsel %vm1185, 0, %v1184
        %v1187 = vsub.s32 32, %v1186
        %v1188 = vshll.u32 %v1179, %v1186
        %v1189 = vshrl.u32 %v1171, %v1187
        %v1190 = vor.u32 %v1188, %v1189
        %v1191 = vsub.s32 4294967266, %v1186
        %v1192 = vadd.s32 %v1191, 127
        %v1193 = vshll.u32 %v1192, 23
        %v1194 = vor.u32 4788187, %v1193
        %v1195 = vand.u32 2147483647, %v1194
        %v1197 = vcvt.s32.f32 %v1190
        %v1198 = vmul.f32 %v1197, %v1195
        %v1199 = vxor.u32 %v1198, 2147483648
        %v1200 = vsel %vm1117, %v1199, %v1198
        %v1201 = vsub.s32 4, %v1177
        %v1202 = vsel %vm1117, %v1201, %v1177
        %v1203 = vsel %vm1116, %v445, %v1200
        %v1204 = vsel %vm1116, 0, %v1202
        %v1205 = vcosq.f32.pop %v1203
        %v1206 = vsinq.f32.pop %v1203
        %vm1207 = vweird.f32 %v445
        %v1208 = vand.u32 %v1204, 3
        %vm1209 = vcmp.lt.s32.totalorder %v1208, 2
        %vm1210 = vcmp.eq.s32.totalorder %v1208, 0
        %v1211 = vxor.u32 %v1206, 2147483648
        %v1212 = vsel %vm1210, %v1205, %v1211
        %vm1213 = vcmp.eq.s32.totalorder %v1208, 2
        %v1214 = vxor.u32 %v1205, 2147483648
        %v1215 = vsel %vm1213, %v1214, %v1206
        %v1216 = vsel %vm1209, %v1212, %v1215
        %v1217 = vsel %vm1207, nan, %v1216
        %v1218 = vand.u32 2147483647, %v477
        %vm1219 = vcmp.le.f32.partialorder %v1218, 0.7853982
        %vm1220 = vcmp.lt.s32.totalorder %v477, 0
        %v1221 = vand.u32 %v477, 2139095040
        %v1222 = vshrl.u32 %v1221, 23
        %v1223 = vsub.s32 %v1222, 127
        %v1224 = vand.u32 2147483647, %v477
        %v1225 = vand.u32 %v1224, 8388607
        %v1226 = vor.u32 %v1225, 8388608
        %v1227 = vsub.s32 0, %v1226
        %v1228 = vadd.s32 %v1223, 1
        %vm1229 = vcmp.gt.s32.totalorder %v1228, 0
        %v1230 = vsel %vm1229, %v1228, 0
        %v1231 = vshrl.u32 %v1230, 5
        %v1232 = vand.u32 %v1230, 31
        %v1233 = vsub.s32 32, %v1232
        %v1234 = vshrl.u32 683565275, %v1233
        %v1235 = vshll.u32 683565275, %v1232
        %v1236 = vshrl.u32 2475754826, %v1233
        %v1237 = vor.u32 %v1235, %v1236
        %v1238 = vshll.u32 2475754826, %v1232
        %v1239 = vshrl.u32 2131351028, %v1233
        %v1240 = vor.u32 %v1238, %v1239
        %v1241 = vshll.u32 2131351028, %v1232
        %v1242 = vshrl.u32 2102212464, %v1233
        %v1243 = vor.u32 %v1241, %v1242
        %v1244 = vshll.u32 2102212464, %v1232
        %v1245 = vshrl.u32 920167782, %v1233
        %v1246 = vor.u32 %v1244, %v1245
        %v1247 = vshll.u32 920167782, %v1232
        %v1248 = vshrl.u32 1326507024, %v1233
        %v1249 = vor.u32 %v1247, %v1248
        %vm1250 = vcmp.lt.s32.totalorder %v1231, 1
        %vm1251 = vcmp.lt.s32.totalorder %v1231, 2
        %vm1252 = vcmp.lt.s32.totalorder %v1231, 3
        %vm1253 = vcmp.lt.s32.totalorder %v1231, 4
        %v1254 = vsel %vm1250, %v1234, %v1237
        %v1255 = vsel %vm1253, %v1243, 2102212464
        %v1256 = vsel %vm1252, %v1240, %v1255
        %v1257 = vsel %vm1251, %v1254, %v1256
        %v1258 = vsel %vm1250, %v1237, %v1240
        %v1259 = vsel %vm1253, %v1246, 920167782
        %v1260 = vsel %vm1252, %v1243, %v1259
        %v1261 = vsel %vm1251, %v1258, %v1260
        %v1262 = vsel %vm1250, %v1240, %v1243
        %v1263 = vsel %vm1253, %v1249, 1326507024
        %v1264 = vsel %vm1252, %v1246, %v1263
        %v1265 = vsel %vm1251, %v1262, %v1264
        %v1266 = vshll.u32 %v1226, 8
        %v1267 = vmul.u32.u64.compose %v1266, %v1265
        %v1268 = vextract.low.u32 %v1267
        %v1269 = vextract.high.u32 %v1267
        %v1270 = vmul.u32.u64.compose %v1266, %v1261
        %v1271 = vextract.low.u32 %v1270
        %v1272 = vextract.high.u32 %v1270
        %v1273 = vmul.u32 %v1266, %v1257
        %v1274 = vadd.s32 %v1269, %v1271
        %vm1275 = vc.u32 %v1269, %v1271
        %v1276 = vadd.s32 %v1272, 1
        %v1277 = vsel %vm1275, %v1276, %v1272
        %v1278 = vadd.s32 %v1273, %v1277
        %v1279 = vadd.s32 %v1278, 536870912
        %v1280 = vshrl.u32 %v1279, 30
        %v1281 = vshll.u32 %v1280, 30
        %v1282 = vsub.s32 %v1278, %v1281
        %vm1283 = vcmp.lt.s32.totalorder %v1282, 0
        %v1284 = vsub.s32 0, %v1282
        %v1285 = vsel %vm1283, %v1284, %v1282
        %v1286 = vclz %v1285
        %v1287 = vsub.s32 %v1286, 2
        %vm1288 = vcmp.gt.s32.totalorder 0, %v1287
        %v1289 = vsel %vm1288, 0, %v1287
        %v1290 = vsub.s32 32, %v1289
        %v1291 = vshll.u32 %v1282, %v1289
        %v1292 = vshrl.u32 %v1274, %v1290
        %v1293 = vor.u32 %v1291, %v1292
        %v1294 = vsub.s32 4294967266, %v1289
        %v1295 = vadd.s32 %v1294, 127
        %v1296 = vshll.u32 %v1295, 23
        %v1297 = vor.u32 4788187, %v1296
        %v1298 = vand.u32 2147483647, %v1297
        %v1300 = vcvt.s32.f32 %v1293
        %v1301 = vmul.f32 %v1300, %v1298
        %v1302 = vxor.u32 %v1301, 2147483648
        %v1303 = vsel %vm1220, %v1302, %v1301
        %v1304 = vsub.s32 4, %v1280
        %v1305 = vsel %vm1220, %v1304, %v1280
        %v1306 = vsel %vm1219, %v477, %v1303
        %v1307 = vsel %vm1219, 0, %v1305
        %v1308 = vcosq.f32.pop %v1306
        %v1309 = vsinq.f32.pop %v1306
        %vm1310 = vweird.f32 %v477
        %v1311 = vand.u32 %v1307, 3
        %vm1312 = vcmp.lt.s32.totalorder %v1311, 2
        %vm1313 = vcmp.eq.s32.totalorder %v1311, 0
        %v1314 = vxor.u32 %v1309, 2147483648
        %v1315 = vsel %vm1313, %v1308, %v1314
        %vm1316 = vcmp.eq.s32.totalorder %v1311, 2
        %v1317 = vxor.u32 %v1308, 2147483648
        %v1318 = vsel %vm1316, %v1317, %v1309
        %v1319 = vsel %vm1312, %v1315, %v1318
        %v1320 = vsel %vm1310, nan, %v1319
        %v1325 = vrot.slane %v596, 6
        %v1326 = vrot.slane %v700, 6
        %v1327 = vrot.slane %v804, 6
        %v1328 = vrot.slane %v908, 6
        %v1337 = vrot.slane %v1011, 4
        %v1338 = vrot.slane %v1114, 4
        %v1339 = vrot.slane %v1217, 4
        %v1340 = vrot.slane %v1320, 4
        %vm1345 = vcmask 1041408
        %v1346 = vsel %vm1345, %v381, %v1325
        %v1347 = vsel %vm1345, %v413, %v1326
        %v1348 = vsel %vm1345, %v445, %v1327
        %v1349 = vsel %vm1345, %v477, %v1328
        %vm1350 = vcmask 1043456
        %v1351 = vsel %vm1350, %v1346, %v1337
        %v1352 = vsel %vm1350, %v1347, %v1338
        %v1353 = vsel %vm1350, %v1348, %v1339
        %v1354 = vsel %vm1350, %v1349, %v1340
        %v1355 = vld [vmem:[%s1] sm:$0xf]
        %v1356 = vld [vmem:[%s1 + $0x4] sm:$0xf]
        %v1357 = vld [vmem:[%s1 + $0x8] sm:$0xf]
        %v1358 = vld [vmem:[%s1 + $0xc] sm:$0xf]
        %v1359 = vld [vmem:[%s2] sm:$0xff]
        %v1360 = vld [vmem:[%s2 + $0x8] sm:$0xff]
        %v1361 = vld [vmem:[%s2 + $0x10] sm:$0xff]
        %v1362 = vld [vmem:[%s2 + $0x18] sm:$0xff]
        %v1363 = vpack.c.bf16 %v1351, %v1351
        %v1364 = vpack.c.bf16 %v1352, %v1352
        %v1365 = vpack.c.bf16 %v1353, %v1353
        %v1366 = vpack.c.bf16 %v1354, %v1354
        %1368 = vset.pattern.permute.xlu0 0
        %1369 = vperm.xlu0 %1368, %v1359
        %v1370 = vpop.permute.xlu0 %1369
        %1373 = vset.pattern.permute.xlu0 0
        %1374 = vperm.xlu0 %1373, %v1360
        %v1375 = vpop.permute.xlu0 %1374
        %1378 = vset.pattern.permute.xlu0 0
        %1379 = vperm.xlu0 %1378, %v1361
        %v1380 = vpop.permute.xlu0 %1379
        %1383 = vset.pattern.permute.xlu0 0
        %1384 = vperm.xlu0 %1383, %v1362
        %v1385 = vpop.permute.xlu0 %1384
        %v1391 = vunpack.c.l.b16 %v1355
        %v1392 = vunpack.c.l.b16 %v1356
        %v1393 = vunpack.c.l.b16 %v1357
        %v1394 = vunpack.c.l.b16 %v1358
        %v1395 = vpack.c.b16 %v1392, %v1391
        %v1396 = vpack.c.b16 %v1394, %v1393
        %vm1397 = vcmask 48128
        %v1399 = vsel %vm1397, %v1395, 0
        %v1402 = vsel %vm1397, %v1396, 0
        %vm1404 = vcmask 1042432
        %v1406 = vsel %vm1404, %v1363, 0
        %v1409 = vsel %vm1404, %v1364, 0
        %v1412 = vsel %vm1404, %v1365, 0
        %v1415 = vsel %vm1404, %v1366, 0
        %1417 = vmatprep.subr.bf16.mxu0 0
        %1418 = vmatpush1.bf16.msra.mxu0 0
        %1419 = vmatprep.subr.bf16.mxu0 0
        %1420 = vmatpush1.bf16.msra.mxu0 0
        %1421 = vmatprep.subr.bf16.mxu0 0
        %1422 = vmatpush1.bf16.msra.mxu0 0
        %1423 = vmatprep.subr.bf16.mxu0 0
        %1424 = vmatpush1.bf16.msra.mxu0 0
        %1425 = vmatprep.subr.bf16.mxu0 0
        %1426 = vmatpush1.bf16.msra.mxu0 0
        %1427 = vmatprep.subr.bf16.mxu0 0
        %1428 = vmatpush1.bf16.msra.mxu0 0
        %1429 = vmatprep.subr.bf16.mxu0 0
        %1430 = vmatpush1.bf16.msra.mxu0 0
        %1431 = vmatprep.subr.bf16.mxu0 %v1409
        %1432 = vmatpush1.bf16.msra.mxu0 %v1406
        %1433 = vmatprep.subr.bf16.mxu0 0
        %1434 = vmatpush2.bf16.msra.mxu0 0
        %1435 = vmatprep.subr.bf16.mxu0 0
        %1436 = vmatpush2.bf16.msra.mxu0 0
        %1437 = vmatprep.subr.bf16.mxu0 0
        %1438 = vmatpush2.bf16.msra.mxu0 0
        %1439 = vmatprep.subr.bf16.mxu0 0
        %1440 = vmatpush2.bf16.msra.mxu0 0
        %1441 = vmatprep.subr.bf16.mxu0 0
        %1442 = vmatpush2.bf16.msra.mxu0 0
        %1443 = vmatprep.subr.bf16.mxu0 0
        %1444 = vmatpush2.bf16.msra.mxu0 0
        %1445 = vmatprep.subr.bf16.mxu0 0
        %1446 = vmatpush2.bf16.msra.mxu0 0
        %1447 = vmatprep.subr.bf16.mxu0 0
        %1448 = vmatpush2.bf16.msra.mxu0 0
        %1449 = vmatprep.mubr.bf16.mxu0 0
        %1450 = vmatmul.mubr.bf16.gmra.mxu0 %v1399
        %v1451 = vpop.f32.mrf.mxu0
        %v1452 = vadd.f32 %v1370, %v1451
        %v1453 = vpop.f32.mrf.mxu0
        %v1454 = vadd.f32 %v1370, %v1453
        %v1455 = vpop.f32.mrf.mxu0
        %v1456 = vadd.f32 %v1375, %v1455
        %v1457 = vpop.f32.mrf.mxu0
        %v1458 = vadd.f32 %v1375, %v1457
        %1459 = vmatprep.mubr.bf16.mxu0 0
        %1460 = vmatmul.mubr.bf16.gmra.mxu0 %v1402
        %v1461 = vpop.f32.mrf.mxu0
        %v1462 = vadd.f32 %v1380, %v1461
        %v1463 = vpop.f32.mrf.mxu0
        %v1464 = vadd.f32 %v1380, %v1463
        %v1465 = vpop.f32.mrf.mxu0
        %v1466 = vadd.f32 %v1385, %v1465
        %v1467 = vpop.f32.mrf.mxu0
        %v1468 = vadd.f32 %v1385, %v1467
        %1469 = vdwg.mxu0
        %1470 = vmatprep.subr.bf16.mxu0 0
        %1471 = vmatpush1.bf16.msra.mxu0 0
        %1472 = vmatprep.subr.bf16.mxu0 0
        %1473 = vmatpush1.bf16.msra.mxu0 0
        %1474 = vmatprep.subr.bf16.mxu0 0
        %1475 = vmatpush1.bf16.msra.mxu0 0
        %1476 = vmatprep.subr.bf16.mxu0 0
        %1477 = vmatpush1.bf16.msra.mxu0 0
        %1478 = vmatprep.subr.bf16.mxu0 0
        %1479 = vmatpush1.bf16.msra.mxu0 0
        %1480 = vmatprep.subr.bf16.mxu0 0
        %1481 = vmatpush1.bf16.msra.mxu0 0
        %1482 = vmatprep.subr.bf16.mxu0 0
        %1483 = vmatpush1.bf16.msra.mxu0 0
        %1484 = vmatprep.subr.bf16.mxu0 %v1415
        %1485 = vmatpush1.bf16.msra.mxu0 %v1412
        %1486 = vmatprep.subr.bf16.mxu0 0
        %1487 = vmatpush2.bf16.msra.mxu0 0
        %1488 = vmatprep.subr.bf16.mxu0 0
        %1489 = vmatpush2.bf16.msra.mxu0 0
        %1490 = vmatprep.subr.bf16.mxu0 0
        %1491 = vmatpush2.bf16.msra.mxu0 0
        %1492 = vmatprep.subr.bf16.mxu0 0
        %1493 = vmatpush2.bf16.msra.mxu0 0
        %1494 = vmatprep.subr.bf16.mxu0 0
        %1495 = vmatpush2.bf16.msra.mxu0 0
        %1496 = vmatprep.subr.bf16.mxu0 0
        %1497 = vmatpush2.bf16.msra.mxu0 0
        %1498 = vmatprep.subr.bf16.mxu0 0
        %1499 = vmatpush2.bf16.msra.mxu0 0
        %1500 = vmatprep.subr.bf16.mxu0 0
        %1501 = vmatpush2.bf16.msra.mxu0 0
        %1502 = vmatprep.mubr.bf16.mxu0 0
        %1503 = vmatmul.mubr.bf16.gmra.mxu0 %v1399
        %v1504 = vpop.f32.mrf.mxu0
        %v1505 = vadd.f32 %v1370, %v1504
        %v1506 = vpop.f32.mrf.mxu0
        %v1507 = vadd.f32 %v1370, %v1506
        %v1508 = vpop.f32.mrf.mxu0
        %v1509 = vadd.f32 %v1375, %v1508
        %v1510 = vpop.f32.mrf.mxu0
        %v1511 = vadd.f32 %v1375, %v1510
        %1512 = vmatprep.mubr.bf16.mxu0 0
        %1513 = vmatmul.mubr.bf16.gmra.mxu0 %v1402
        %v1514 = vpop.f32.mrf.mxu0
        %v1515 = vadd.f32 %v1380, %v1514
        %v1516 = vpop.f32.mrf.mxu0
        %v1517 = vadd.f32 %v1380, %v1516
        %v1518 = vpop.f32.mrf.mxu0
        %v1519 = vadd.f32 %v1385, %v1518
        %v1520 = vpop.f32.mrf.mxu0
        %v1521 = vadd.f32 %v1385, %v1520
        %1522 = vdwg.mxu0
        %v1523 = vmax.f32 %v1452, 0.0
        %v1524 = vmax.f32 %v1454, 0.0
        %v1525 = vmax.f32 %v1505, 0.0
        %v1526 = vmax.f32 %v1507, 0.0
        %v1527 = vmax.f32 %v1456, 0.0
        %v1528 = vmax.f32 %v1458, 0.0
        %v1529 = vmax.f32 %v1509, 0.0
        %v1530 = vmax.f32 %v1511, 0.0
        %v1531 = vmax.f32 %v1462, 0.0
        %v1532 = vmax.f32 %v1464, 0.0
        %v1533 = vmax.f32 %v1515, 0.0
        %v1534 = vmax.f32 %v1517, 0.0
        %v1535 = vmax.f32 %v1466, 0.0
        %v1536 = vmax.f32 %v1468, 0.0
        %v1537 = vmax.f32 %v1519, 0.0
        %v1538 = vmax.f32 %v1521, 0.0
        %v1539 = vld [vmem:[%s3] sm:$0xf]
        %v1540 = vld [vmem:[%s3 + $0x4] sm:$0xf]
        %v1541 = vld [vmem:[%s3 + $0x8] sm:$0xf]
        %v1542 = vld [vmem:[%s3 + $0xc] sm:$0xf]
        %v1543 = vld [vmem:[%s4] sm:$0xff]
        %v1544 = vld [vmem:[%s4 + $0x8] sm:$0xff]
        %v1545 = vld [vmem:[%s4 + $0x10] sm:$0xff]
        %v1546 = vld [vmem:[%s4 + $0x18] sm:$0xff]
        %v1547 = vpack.c.bf16 %v1527, %v1523
        %v1548 = vpack.c.bf16 %v1528, %v1524
        %v1549 = vpack.c.bf16 %v1529, %v1525
        %v1550 = vpack.c.bf16 %v1530, %v1526
        %v1551 = vpack.c.bf16 %v1535, %v1531
        %v1552 = vpack.c.bf16 %v1536, %v1532
        %v1553 = vpack.c.bf16 %v1537, %v1533
        %v1554 = vpack.c.bf16 %v1538, %v1534
        %1556 = vset.pattern.permute.xlu0 0
        %1557 = vperm.xlu0 %1556, %v1543
        %v1558 = vpop.permute.xlu0 %1557
        %1561 = vset.pattern.permute.xlu0 0
        %1562 = vperm.xlu0 %1561, %v1544
        %v1563 = vpop.permute.xlu0 %1562
        %1566 = vset.pattern.permute.xlu0 0
        %1567 = vperm.xlu0 %1566, %v1545
        %v1568 = vpop.permute.xlu0 %1567
        %1571 = vset.pattern.permute.xlu0 0
        %1572 = vperm.xlu0 %1571, %v1546
        %v1573 = vpop.permute.xlu0 %1572
        %v1579 = vunpack.c.l.b16 %v1539
        %v1580 = vunpack.c.l.b16 %v1540
        %v1581 = vunpack.c.l.b16 %v1541
        %v1582 = vunpack.c.l.b16 %v1542
        %v1583 = vpack.c.b16 %v1580, %v1579
        %v1584 = vpack.c.b16 %v1582, %v1581
        %vm1585 = vcmask 261120
        %v1587 = vsel %vm1585, %v1583, 0
        %v1590 = vsel %vm1585, %v1584, 0
        %1592 = vmatprep.subr.bf16.mxu0 0
        %1593 = vmatpush1.bf16.msra.mxu0 0
        %1594 = vmatprep.subr.bf16.mxu0 0
        %1595 = vmatpush1.bf16.msra.mxu0 0
        %1596 = vmatprep.subr.bf16.mxu0 0
        %1597 = vmatpush1.bf16.msra.mxu0 0
        %1598 = vmatprep.subr.bf16.mxu0 0
        %1599 = vmatpush1.bf16.msra.mxu0 0
        %1600 = vmatprep.subr.bf16.mxu0 0
        %1601 = vmatpush1.bf16.msra.mxu0 0
        %1602 = vmatprep.subr.bf16.mxu0 0
        %1603 = vmatpush1.bf16.msra.mxu0 0
        %1604 = vmatprep.subr.bf16.mxu0 %v1552
        %1605 = vmatpush1.bf16.msra.mxu0 %v1551
        %1606 = vmatprep.subr.bf16.mxu0 %v1548
        %1607 = vmatpush1.bf16.msra.mxu0 %v1547
        %1608 = vmatprep.subr.bf16.mxu0 0
        %1609 = vmatpush2.bf16.msra.mxu0 0
        %1610 = vmatprep.subr.bf16.mxu0 0
        %1611 = vmatpush2.bf16.msra.mxu0 0
        %1612 = vmatprep.subr.bf16.mxu0 0
        %1613 = vmatpush2.bf16.msra.mxu0 0
        %1614 = vmatprep.subr.bf16.mxu0 0
        %1615 = vmatpush2.bf16.msra.mxu0 0
        %1616 = vmatprep.subr.bf16.mxu0 0
        %1617 = vmatpush2.bf16.msra.mxu0 0
        %1618 = vmatprep.subr.bf16.mxu0 0
        %1619 = vmatpush2.bf16.msra.mxu0 0
        %1620 = vmatprep.subr.bf16.mxu0 0
        %1621 = vmatpush2.bf16.msra.mxu0 0
        %1622 = vmatprep.subr.bf16.mxu0 0
        %1623 = vmatpush2.bf16.msra.mxu0 0
        %1624 = vmatprep.mubr.bf16.mxu0 0
        %1625 = vmatmul.mubr.bf16.gmra.mxu0 %v1587
        %v1626 = vpop.f32.mrf.mxu0
        %v1627 = vadd.f32 %v1558, %v1626
        %v1628 = vpop.f32.mrf.mxu0
        %v1629 = vadd.f32 %v1558, %v1628
        %v1630 = vpop.f32.mrf.mxu0
        %v1631 = vadd.f32 %v1563, %v1630
        %v1632 = vpop.f32.mrf.mxu0
        %v1633 = vadd.f32 %v1563, %v1632
        %1634 = vmatprep.mubr.bf16.mxu0 0
        %1635 = vmatmul.mubr.bf16.gmra.mxu0 %v1590
        %v1636 = vpop.f32.mrf.mxu0
        %v1637 = vadd.f32 %v1568, %v1636
        %v1638 = vpop.f32.mrf.mxu0
        %v1639 = vadd.f32 %v1568, %v1638
        %v1640 = vpop.f32.mrf.mxu0
        %v1641 = vadd.f32 %v1573, %v1640
        %v1642 = vpop.f32.mrf.mxu0
        %v1643 = vadd.f32 %v1573, %v1642
        %1644 = vdwg.mxu0
        %1645 = vmatprep.subr.bf16.mxu0 0
        %1646 = vmatpush1.bf16.msra.mxu0 0
        %1647 = vmatprep.subr.bf16.mxu0 0
        %1648 = vmatpush1.bf16.msra.mxu0 0
        %1649 = vmatprep.subr.bf16.mxu0 0
        %1650 = vmatpush1.bf16.msra.mxu0 0
        %1651 = vmatprep.subr.bf16.mxu0 0
        %1652 = vmatpush1.bf16.msra.mxu0 0
        %1653 = vmatprep.subr.bf16.mxu0 0
        %1654 = vmatpush1.bf16.msra.mxu0 0
        %1655 = vmatprep.subr.bf16.mxu0 0
        %1656 = vmatpush1.bf16.msra.mxu0 0
        %1657 = vmatprep.subr.bf16.mxu0 %v1554
        %1658 = vmatpush1.bf16.msra.mxu0 %v1553
        %1659 = vmatprep.subr.bf16.mxu0 %v1550
        %1660 = vmatpush1.bf16.msra.mxu0 %v1549
        %1661 = vmatprep.subr.bf16.mxu0 0
        %1662 = vmatpush2.bf16.msra.mxu0 0
        %1663 = vmatprep.subr.bf16.mxu0 0
        %1664 = vmatpush2.bf16.msra.mxu0 0
        %1665 = vmatprep.subr.bf16.mxu0 0
        %1666 = vmatpush2.bf16.msra.mxu0 0
        %1667 = vmatprep.subr.bf16.mxu0 0
        %1668 = vmatpush2.bf16.msra.mxu0 0
        %1669 = vmatprep.subr.bf16.mxu0 0
        %1670 = vmatpush2.bf16.msra.mxu0 0
        %1671 = vmatprep.subr.bf16.mxu0 0
        %1672 = vmatpush2.bf16.msra.mxu0 0
        %1673 = vmatprep.subr.bf16.mxu0 0
        %1674 = vmatpush2.bf16.msra.mxu0 0
        %1675 = vmatprep.subr.bf16.mxu0 0
        %1676 = vmatpush2.bf16.msra.mxu0 0
        %1677 = vmatprep.mubr.bf16.mxu0 0
        %1678 = vmatmul.mubr.bf16.gmra.mxu0 %v1587
        %v1679 = vpop.f32.mrf.mxu0
        %v1680 = vadd.f32 %v1558, %v1679
        %v1681 = vpop.f32.mrf.mxu0
        %v1682 = vadd.f32 %v1558, %v1681
        %v1683 = vpop.f32.mrf.mxu0
        %v1684 = vadd.f32 %v1563, %v1683
        %v1685 = vpop.f32.mrf.mxu0
        %v1686 = vadd.f32 %v1563, %v1685
        %1687 = vmatprep.mubr.bf16.mxu0 0
        %1688 = vmatmul.mubr.bf16.gmra.mxu0 %v1590
        %v1689 = vpop.f32.mrf.mxu0
        %v1690 = vadd.f32 %v1568, %v1689
        %v1691 = vpop.f32.mrf.mxu0
        %v1692 = vadd.f32 %v1568, %v1691
        %v1693 = vpop.f32.mrf.mxu0
        %v1694 = vadd.f32 %v1573, %v1693
        %v1695 = vpop.f32.mrf.mxu0
        %v1696 = vadd.f32 %v1573, %v1695
        %1697 = vdwg.mxu0
        %v1698 = vmax.f32 %v1627, 0.0
        %v1699 = vmax.f32 %v1629, 0.0
        %v1700 = vmax.f32 %v1680, 0.0
        %v1701 = vmax.f32 %v1682, 0.0
        %v1702 = vmax.f32 %v1631, 0.0
        %v1703 = vmax.f32 %v1633, 0.0
        %v1704 = vmax.f32 %v1684, 0.0
        %v1705 = vmax.f32 %v1686, 0.0
        %v1706 = vmax.f32 %v1637, 0.0
        %v1707 = vmax.f32 %v1639, 0.0
        %v1708 = vmax.f32 %v1690, 0.0
        %v1709 = vmax.f32 %v1692, 0.0
        %v1710 = vmax.f32 %v1641, 0.0
        %v1711 = vmax.f32 %v1643, 0.0
        %v1712 = vmax.f32 %v1694, 0.0
        %v1713 = vmax.f32 %v1696, 0.0
        %v1714 = vld [vmem:[%s5] sm:$0x3]
        %v1715 = vld [vmem:[%s6] sm:$0x7]
        %v1716 = vpack.c.bf16 %v1702, %v1698
        %v1717 = vpack.c.bf16 %v1703, %v1699
        %v1718 = vpack.c.bf16 %v1704, %v1700
        %v1719 = vpack.c.bf16 %v1705, %v1701
        %v1720 = vpack.c.bf16 %v1710, %v1706
        %v1721 = vpack.c.bf16 %v1711, %v1707
        %v1722 = vpack.c.bf16 %v1712, %v1708
        %v1723 = vpack.c.bf16 %v1713, %v1709
        %1725 = vset.pattern.permute.xlu0 0
        %1726 = vperm.xlu0 %1725, %v1715
        %v1727 = vpop.permute.xlu0 %1726
        %v1730 = vsel %vm1585, %v1714, 0
        %1732 = vmatprep.subr.bf16.mxu0 0
        %1733 = vmatpush1.bf16.msra.mxu0 0
        %1734 = vmatprep.subr.bf16.mxu0 0
        %1735 = vmatpush1.bf16.msra.mxu0 0
        %1736 = vmatprep.subr.bf16.mxu0 0
        %1737 = vmatpush1.bf16.msra.mxu0 0
        %1738 = vmatprep.subr.bf16.mxu0 0
        %1739 = vmatpush1.bf16.msra.mxu0 0
        %1740 = vmatprep.subr.bf16.mxu0 0
        %1741 = vmatpush1.bf16.msra.mxu0 0
        %1742 = vmatprep.subr.bf16.mxu0 0
        %1743 = vmatpush1.bf16.msra.mxu0 0
        %1744 = vmatprep.subr.bf16.mxu0 %v1721
        %1745 = vmatpush1.bf16.msra.mxu0 %v1720
        %1746 = vmatprep.subr.bf16.mxu0 %v1717
        %1747 = vmatpush1.bf16.msra.mxu0 %v1716
        %1748 = vmatprep.subr.bf16.mxu0 0
        %1749 = vmatpush2.bf16.msra.mxu0 0
        %1750 = vmatprep.subr.bf16.mxu0 0
        %1751 = vmatpush2.bf16.msra.mxu0 0
        %1752 = vmatprep.subr.bf16.mxu0 0
        %1753 = vmatpush2.bf16.msra.mxu0 0
        %1754 = vmatprep.subr.bf16.mxu0 0
        %1755 = vmatpush2.bf16.msra.mxu0 0
        %1756 = vmatprep.subr.bf16.mxu0 0
        %1757 = vmatpush2.bf16.msra.mxu0 0
        %1758 = vmatprep.subr.bf16.mxu0 0
        %1759 = vmatpush2.bf16.msra.mxu0 0
        %1760 = vmatprep.subr.bf16.mxu0 0
        %1761 = vmatpush2.bf16.msra.mxu0 0
        %1762 = vmatprep.subr.bf16.mxu0 0
        %1763 = vmatpush2.bf16.msra.mxu0 0
        %1764 = vmatprep.mubr.bf16.mxu0 0
        %1765 = vmatmul.mubr.bf16.gmra.mxu0 %v1730
        %v1766 = vpop.f32.mrf.mxu0
        %v1767 = vadd.f32 %v1727, %v1766
        %v1768 = vpop.f32.mrf.mxu0
        %v1769 = vadd.f32 %v1727, %v1768
        %v1770 = vpop.f32.mrf.mxu0
        %v1771 = vpop.f32.mrf.mxu0
        %1772 = vdwg.mxu0
        %1773 = vmatprep.subr.bf16.mxu0 0
        %1774 = vmatpush1.bf16.msra.mxu0 0
        %1775 = vmatprep.subr.bf16.mxu0 0
        %1776 = vmatpush1.bf16.msra.mxu0 0
        %1777 = vmatprep.subr.bf16.mxu0 0
        %1778 = vmatpush1.bf16.msra.mxu0 0
        %1779 = vmatprep.subr.bf16.mxu0 0
        %1780 = vmatpush1.bf16.msra.mxu0 0
        %1781 = vmatprep.subr.bf16.mxu0 0
        %1782 = vmatpush1.bf16.msra.mxu0 0
        %1783 = vmatprep.subr.bf16.mxu0 0
        %1784 = vmatpush1.bf16.msra.mxu0 0
        %1785 = vmatprep.subr.bf16.mxu0 %v1723
        %1786 = vmatpush1.bf16.msra.mxu0 %v1722
        %1787 = vmatprep.subr.bf16.mxu0 %v1719
        %1788 = vmatpush1.bf16.msra.mxu0 %v1718
        %1789 = vmatprep.subr.bf16.mxu0 0
        %1790 = vmatpush2.bf16.msra.mxu0 0
        %1791 = vmatprep.subr.bf16.mxu0 0
        %1792 = vmatpush2.bf16.msra.mxu0 0
        %1793 = vmatprep.subr.bf16.mxu0 0
        %1794 = vmatpush2.bf16.msra.mxu0 0
        %1795 = vmatprep.subr.bf16.mxu0 0
        %1796 = vmatpush2.bf16.msra.mxu0 0
        %1797 = vmatprep.subr.bf16.mxu0 0
        %1798 = vmatpush2.bf16.msra.mxu0 0
        %1799 = vmatprep.subr.bf16.mxu0 0
        %1800 = vmatpush2.bf16.msra.mxu0 0
        %1801 = vmatprep.subr.bf16.mxu0 0
        %1802 = vmatpush2.bf16.msra.mxu0 0
        %1803 = vmatprep.subr.bf16.mxu0 0
        %1804 = vmatpush2.bf16.msra.mxu0 0
        %1805 = vmatprep.mubr.bf16.mxu0 0
        %1806 = vmatmul.mubr.bf16.gmra.mxu0 %v1730
        %v1807 = vpop.f32.mrf.mxu0
        %v1808 = vadd.f32 %v1727, %v1807
        %v1809 = vpop.f32.mrf.mxu0
        %v1810 = vadd.f32 %v1727, %v1809
        %v1811 = vpop.f32.mrf.mxu0
        %v1812 = vpop.f32.mrf.mxu0
        %1813 = vdwg.mxu0
        %v1814 = vtanh.pop %v1767
        %v1815 = vtanh.pop %v1769
        %v1816 = vtanh.pop %v1808
        %v1817 = vtanh.pop %v1810
        %1818 = vxpose.xlu0.b32.start [1/16] %v1814, 128
        %1819 = vxpose.xlu0.b32.cont [2/16] 0.0, 128
        %1820 = vxpose.xlu0.b32.cont [3/16] 0.0, 128
        %1821 = vxpose.xlu0.b32.cont [4/16] 0.0, 128
        %1822 = vxpose.xlu0.b32.cont [5/16] 0.0, 128
        %1823 = vxpose.xlu0.b32.cont [6/16] 0.0, 128
        %1824 = vxpose.xlu0.b32.cont [7/16] 0.0, 128
        %1825 = vxpose.xlu0.b32.cont [8/16] 0.0, 128
        %1826 = vxpose.xlu0.b32.cont [9/16] 0.0, 128
        %1827 = vxpose.xlu0.b32.cont [10/16] 0.0, 128
        %1828 = vxpose.xlu0.b32.cont [11/16] 0.0, 128
        %1829 = vxpose.xlu0.b32.cont [12/16] 0.0, 128
        %1830 = vxpose.xlu0.b32.cont [13/16] 0.0, 128
        %1831 = vxpose.xlu0.b32.cont [14/16] 0.0, 128
        %1832 = vxpose.xlu0.b32.cont [15/16] 0.0, 128
        %1833 = vxpose.xlu0.b32.end [16/16] 0.0, 128
        %v1834 = vpop.trf.xlu0
        %v1835 = vpop.trf.xlu0
        %v1836 = vpop.trf.xlu0
        %v1837 = vpop.trf.xlu0
        %v1838 = vpop.trf.xlu0
        %v1839 = vpop.trf.xlu0
        %v1840 = vpop.trf.xlu0
        %v1841 = vpop.trf.xlu0
        %v1842 = vpop.trf.xlu0
        %v1843 = vpop.trf.xlu0
        %v1844 = vpop.trf.xlu0
        %v1845 = vpop.trf.xlu0
        %v1846 = vpop.trf.xlu0
        %v1847 = vpop.trf.xlu0
        %v1848 = vpop.trf.xlu0
        %v1849 = vpop.trf.xlu0
        %1850 = vxpose.xlu0.b32.start [1/16] %v1815, 128
        %1851 = vxpose.xlu0.b32.cont [2/16] 0.0, 128
        %1852 = vxpose.xlu0.b32.cont [3/16] 0.0, 128
        %1853 = vxpose.xlu0.b32.cont [4/16] 0.0, 128
        %1854 = vxpose.xlu0.b32.cont [5/16] 0.0, 128
        %1855 = vxpose.xlu0.b32.cont [6/16] 0.0, 128
        %1856 = vxpose.xlu0.b32.cont [7/16] 0.0, 128
        %1857 = vxpose.xlu0.b32.cont [8/16] 0.0, 128
        %1858 = vxpose.xlu0.b32.cont [9/16] 0.0, 128
        %1859 = vxpose.xlu0.b32.cont [10/16] 0.0, 128
        %1860 = vxpose.xlu0.b32.cont [11/16] 0.0, 128
        %1861 = vxpose.xlu0.b32.cont [12/16] 0.0, 128
        %1862 = vxpose.xlu0.b32.cont [13/16] 0.0, 128
        %1863 = vxpose.xlu0.b32.cont [14/16] 0.0, 128
        %1864 = vxpose.xlu0.b32.cont [15/16] 0.0, 128
        %1865 = vxpose.xlu0.b32.end [16/16] 0.0, 128
        %v1866 = vpop.trf.xlu0
        %v1867 = vpop.trf.xlu0
        %v1868 = vpop.trf.xlu0
        %v1869 = vpop.trf.xlu0
        %v1870 = vpop.trf.xlu0
        %v1871 = vpop.trf.xlu0
        %v1872 = vpop.trf.xlu0
        %v1873 = vpop.trf.xlu0
        %v1874 = vpop.trf.xlu0
        %v1875 = vpop.trf.xlu0
        %v1876 = vpop.trf.xlu0
        %v1877 = vpop.trf.xlu0
        %v1878 = vpop.trf.xlu0
        %v1879 = vpop.trf.xlu0
        %v1880 = vpop.trf.xlu0
        %v1881 = vpop.trf.xlu0
        %1882 = vxpose.xlu0.b32.start [1/16] %v1816, 128
        %1883 = vxpose.xlu0.b32.cont [2/16] 0.0, 128
        %1884 = vxpose.xlu0.b32.cont [3/16] 0.0, 128
        %1885 = vxpose.xlu0.b32.cont [4/16] 0.0, 128
        %1886 = vxpose.xlu0.b32.cont [5/16] 0.0, 128
        %1887 = vxpose.xlu0.b32.cont [6/16] 0.0, 128
        %1888 = vxpose.xlu0.b32.cont [7/16] 0.0, 128
        %1889 = vxpose.xlu0.b32.cont [8/16] 0.0, 128
        %1890 = vxpose.xlu0.b32.cont [9/16] 0.0, 128
        %1891 = vxpose.xlu0.b32.cont [10/16] 0.0, 128
        %1892 = vxpose.xlu0.b32.cont [11/16] 0.0, 128
        %1893 = vxpose.xlu0.b32.cont [12/16] 0.0, 128
        %1894 = vxpose.xlu0.b32.cont [13/16] 0.0, 128
        %1895 = vxpose.xlu0.b32.cont [14/16] 0.0, 128
        %1896 = vxpose.xlu0.b32.cont [15/16] 0.0, 128
        %1897 = vxpose.xlu0.b32.end [16/16] 0.0, 128
        %v1898 = vpop.trf.xlu0
        %v1899 = vpop.trf.xlu0
        %v1900 = vpop.trf.xlu0
        %v1901 = vpop.trf.xlu0
        %v1902 = vpop.trf.xlu0
        %v1903 = vpop.trf.xlu0
        %v1904 = vpop.trf.xlu0
        %v1905 = vpop.trf.xlu0
        %v1906 = vpop.trf.xlu0
        %v1907 = vpop.trf.xlu0
        %v1908 = vpop.trf.xlu0
        %v1909 = vpop.trf.xlu0
        %v1910 = vpop.trf.xlu0
        %v1911 = vpop.trf.xlu0
        %v1912 = vpop.trf.xlu0
        %v1913 = vpop.trf.xlu0
        %1914 = vxpose.xlu0.b32.start [1/16] %v1817, 128
        %1915 = vxpose.xlu0.b32.cont [2/16] 0.0, 128
        %1916 = vxpose.xlu0.b32.cont [3/16] 0.0, 128
        %1917 = vxpose.xlu0.b32.cont [4/16] 0.0, 128
        %1918 = vxpose.xlu0.b32.cont [5/16] 0.0, 128
        %1919 = vxpose.xlu0.b32.cont [6/16] 0.0, 128
        %1920 = vxpose.xlu0.b32.cont [7/16] 0.0, 128
        %1921 = vxpose.xlu0.b32.cont [8/16] 0.0, 128
        %1922 = vxpose.xlu0.b32.cont [9/16] 0.0, 128
        %1923 = vxpose.xlu0.b32.cont [10/16] 0.0, 128
        %1924 = vxpose.xlu0.b32.cont [11/16] 0.0, 128
        %1925 = vxpose.xlu0.b32.cont [12/16] 0.0, 128
        %1926 = vxpose.xlu0.b32.cont [13/16] 0.0, 128
        %1927 = vxpose.xlu0.b32.cont [14/16] 0.0, 128
        %1928 = vxpose.xlu0.b32.cont [15/16] 0.0, 128
        %1929 = vxpose.xlu0.b32.end [16/16] 0.0, 128
        %v1930 = vpop.trf.xlu0
        %v1931 = vpop.trf.xlu0
        %v1932 = vpop.trf.xlu0
        %v1933 = vpop.trf.xlu0
        %v1934 = vpop.trf.xlu0
        %v1935 = vpop.trf.xlu0
        %v1936 = vpop.trf.xlu0
        %v1937 = vpop.trf.xlu0
        %v1938 = vpop.trf.xlu0
        %v1939 = vpop.trf.xlu0
        %v1940 = vpop.trf.xlu0
        %v1941 = vpop.trf.xlu0
        %v1942 = vpop.trf.xlu0
        %v1943 = vpop.trf.xlu0
        %v1944 = vpop.trf.xlu0
        %v1945 = vpop.trf.xlu0
        %vm1946 = vcmask 23552
        %1947 = vst.msk [vmem:[%s280] sm:$0xff] %vm1946, %v1834
        %1948 = vst.msk [vmem:[%s280 + $0x8] sm:$0xff] %vm1946, %v1835
        %1949 = vst.msk [vmem:[%s280 + $0x10] sm:$0xff] %vm1946, %v1836
        %1950 = vst.msk [vmem:[%s280 + $0x18] sm:$0xff] %vm1946, %v1837
        %1951 = vst.msk [vmem:[%s280 + $0x20] sm:$0xff] %vm1946, %v1838
        %1952 = vst.msk [vmem:[%s280 + $0x28] sm:$0xff] %vm1946, %v1839
        %1953 = vst.msk [vmem:[%s280 + $0x30] sm:$0xff] %vm1946, %v1840
        %1954 = vst.msk [vmem:[%s280 + $0x38] sm:$0xff] %vm1946, %v1841
        %1955 = vst.msk [vmem:[%s280 + $0x40] sm:$0xff] %vm1946, %v1842
        %1956 = vst.msk [vmem:[%s280 + $0x48] sm:$0xff] %vm1946, %v1843
        %1957 = vst.msk [vmem:[%s280 + $0x50] sm:$0xff] %vm1946, %v1844
        %1958 = vst.msk [vmem:[%s280 + $0x58] sm:$0xff] %vm1946, %v1845
        %1959 = vst.msk [vmem:[%s280 + $0x60] sm:$0xff] %vm1946, %v1846
        %1960 = vst.msk [vmem:[%s280 + $0x68] sm:$0xff] %vm1946, %v1847
        %1961 = vst.msk [vmem:[%s280 + $0x70] sm:$0xff] %vm1946, %v1848
        %1962 = vst.msk [vmem:[%s280 + $0x78] sm:$0xff] %vm1946, %v1849
        %1963 = vst.msk [vmem:[%s280 + $0x80] sm:$0xff] %vm1946, %v1866
        %1964 = vst.msk [vmem:[%s280 + $0x88] sm:$0xff] %vm1946, %v1867
        %1965 = vst.msk [vmem:[%s280 + $0x90] sm:$0xff] %vm1946, %v1868
        %1966 = vst.msk [vmem:[%s280 + $0x98] sm:$0xff] %vm1946, %v1869
        %1967 = vst.msk [vmem:[%s280 + $0xa0] sm:$0xff] %vm1946, %v1870
        %1968 = vst.msk [vmem:[%s280 + $0xa8] sm:$0xff] %vm1946, %v1871
        %1969 = vst.msk [vmem:[%s280 + $0xb0] sm:$0xff] %vm1946, %v1872
        %1970 = vst.msk [vmem:[%s280 + $0xb8] sm:$0xff] %vm1946, %v1873
        %1971 = vst.msk [vmem:[%s280 + $0xc0] sm:$0xff] %vm1946, %v1874
        %1972 = vst.msk [vmem:[%s280 + $0xc8] sm:$0xff] %vm1946, %v1875
        %1973 = vst.msk [vmem:[%s280 + $0xd0] sm:$0xff] %vm1946, %v1876
        %1974 = vst.msk [vmem:[%s280 + $0xd8] sm:$0xff] %vm1946, %v1877
        %1975 = vst.msk [vmem:[%s280 + $0xe0] sm:$0xff] %vm1946, %v1878
        %1976 = vst.msk [vmem:[%s280 + $0xe8] sm:$0xff] %vm1946, %v1879
        %1977 = vst.msk [vmem:[%s280 + $0xf0] sm:$0xff] %vm1946, %v1880
        %1978 = vst.msk [vmem:[%s280 + $0xf8] sm:$0xff] %vm1946, %v1881
        %1979 = vst.msk [vmem:[%s280 + $0x100] sm:$0xff] %vm1946, %v1898
        %1980 = vst.msk [vmem:[%s280 + $0x108] sm:$0xff] %vm1946, %v1899
        %1981 = vst.msk [vmem:[%s280 + $0x110] sm:$0xff] %vm1946, %v1900
        %1982 = vst.msk [vmem:[%s280 + $0x118] sm:$0xff] %vm1946, %v1901
        %1983 = vst.msk [vmem:[%s280 + $0x120] sm:$0xff] %vm1946, %v1902
        %1984 = vst.msk [vmem:[%s280 + $0x128] sm:$0xff] %vm1946, %v1903
        %1985 = vst.msk [vmem:[%s280 + $0x130] sm:$0xff] %vm1946, %v1904
        %1986 = vst.msk [vmem:[%s280 + $0x138] sm:$0xff] %vm1946, %v1905
        %1987 = vst.msk [vmem:[%s280 + $0x140] sm:$0xff] %vm1946, %v1906
        %1988 = vst.msk [vmem:[%s280 + $0x148] sm:$0xff] %vm1946, %v1907
        %1989 = vst.msk [vmem:[%s280 + $0x150] sm:$0xff] %vm1946, %v1908
        %1990 = vst.msk [vmem:[%s280 + $0x158] sm:$0xff] %vm1946, %v1909
        %1991 = vst.msk [vmem:[%s280 + $0x160] sm:$0xff] %vm1946, %v1910
        %1992 = vst.msk [vmem:[%s280 + $0x168] sm:$0xff] %vm1946, %v1911
        %1993 = vst.msk [vmem:[%s280 + $0x170] sm:$0xff] %vm1946, %v1912
        %1994 = vst.msk [vmem:[%s280 + $0x178] sm:$0xff] %vm1946, %v1913
        %1995 = vst.msk [vmem:[%s280 + $0x180] sm:$0xff] %vm1946, %v1930
        %1996 = vst.msk [vmem:[%s280 + $0x188] sm:$0xff] %vm1946, %v1931
        %1997 = vst.msk [vmem:[%s280 + $0x190] sm:$0xff] %vm1946, %v1932
        %1998 = vst.msk [vmem:[%s280 + $0x198] sm:$0xff] %vm1946, %v1933
        %1999 = vst.msk [vmem:[%s280 + $0x1a0] sm:$0xff] %vm1946, %v1934
        %2000 = vst.msk [vmem:[%s280 + $0x1a8] sm:$0xff] %vm1946, %v1935
        %2001 = vst.msk [vmem:[%s280 + $0x1b0] sm:$0xff] %vm1946, %v1936
        %2002 = vst.msk [vmem:[%s280 + $0x1b8] sm:$0xff] %vm1946, %v1937
        %2003 = vst.msk [vmem:[%s280 + $0x1c0] sm:$0xff] %vm1946, %v1938
        %2004 = vst.msk [vmem:[%s280 + $0x1c8] sm:$0xff] %vm1946, %v1939
        %2005 = vst.msk [vmem:[%s280 + $0x1d0] sm:$0xff] %vm1946, %v1940
        %2006 = vst.msk [vmem:[%s280 + $0x1d8] sm:$0xff] %vm1946, %v1941
        %2007 = vst.msk [vmem:[%s280 + $0x1e0] sm:$0xff] %vm1946, %v1942
        %2008 = vst.msk [vmem:[%s280 + $0x1e8] sm:$0xff] %vm1946, %v1943
        %2009 = vst.msk [vmem:[%s280 + $0x1f0] sm:$0xff] %vm1946, %v1944
        %2010 = vst.msk [vmem:[%s280 + $0x1f8] sm:$0xff] %vm1946, %v1945
        %s2011 = sand.u32 %s178, 1
        %s2012 = sand.u32 %s178, 1
        %s2013 = smul.addr %s2012, 512
        %s2014 = scalar_lea.vmem [#allocation2], %s2013
        // Predicated region
        $region49: #{tpu_custom_call.1} parent=47 // pred_check
          %p2015 = pneg %p188
        $region50: #{tpu_custom_call.1} parent=47 // pred_check_branch
          %2017 = sbr.rel (%p2015) target = $region52
        $region51: #{tpu_custom_call.1} parent=47 // pred_region
          %s2018 = smul.u32 64, %s18
          %s2019 = ssub.s32 375, %s2018
          %p2020 = scmp.lt.s32.totalorder %s2019, 64
          %s2021 = scalar_select %p2020, %s2019, 64
          %s2022 = smul.u32 128, %s2021
          %p2023 = scmp.ne.s32.totalorder 0, %s2022
          %s2024 = smul.addr %s2018, 8
          %s2025 = scalar_lea.vmem %s7, %s2024
          // Predicated region
          $region53: #{tpu_custom_call.1} parent=51 // pred_check
            %p2026 = pneg %p2023
          $region54: #{tpu_custom_call.1} parent=51 // pred_check_branch
            %2028 = sbr.rel (%p2026) target = $region56
          $region55: #{tpu_custom_call.1} parent=51 // pred_region
            // Predicated region
            $region57: #{tpu_custom_call.1} parent=55 // pred_check
              _
            $region58: #{tpu_custom_call.1} parent=55 // pred_check_branch
              %2030 = sbr.rel (0) target = $region60
            $region59: #{tpu_custom_call.1} parent=55 // pred_region
              // Predicated region
              $region79: #{tpu_custom_call.1} parent=59 // pred_check
                _
              $region80: #{tpu_custom_call.1} parent=59 // pred_check_branch
                %2206 = sbr.rel (0) target = $region82
              $region81: #{tpu_custom_call.1} parent=59 // pred_region
                %s2207 = sshrl.u32 %s2021, 6
                // While loop
                $region83: #{tpu_custom_call.1} parent=81 // loop_pre_header
                  _
                $region84: #{tpu_custom_call.1} parent=81 // loop_header
                  %s2209 = sphi 0, %s2211
                  %p2210 = scmp.ge.s32.totalorder %s2209, %s2207
                  %s2214 = sphi 0, %s2347
                  %s2215 = sphi %s2014, %s2350
                  %s2216 = sphi %s2025, %s2351
                $region85: #{tpu_custom_call.1} parent=81 // loop_header_branch
                  %2213 = sbr.rel (%p2210) target = $region89
                $region86: #{tpu_custom_call.1} parent=81 // loop_body
                  %v2217 = vld [vmem:[%s2215] sm:$0xff]
                  %2218 = vst [vmem:[%s2216] sm:$0xff] %v2217
                  %v2219 = vld [vmem:[%s2215 + $0x8] sm:$0xff]
                  %2220 = vst [vmem:[%s2216 + $0x8] sm:$0xff] %v2219
                  %v2221 = vld [vmem:[%s2215 + $0x10] sm:$0xff]
                  %2222 = vst [vmem:[%s2216 + $0x10] sm:$0xff] %v2221
                  %v2223 = vld [vmem:[%s2215 + $0x18] sm:$0xff]
                  %2224 = vst [vmem:[%s2216 + $0x18] sm:$0xff] %v2223
                  %v2225 = vld [vmem:[%s2215 + $0x20] sm:$0xff]
                  %2226 = vst [vmem:[%s2216 + $0x20] sm:$0xff] %v2225
                  %v2227 = vld [vmem:[%s2215 + $0x28] sm:$0xff]
                  %2228 = vst [vmem:[%s2216 + $0x28] sm:$0xff] %v2227
                  %v2229 = vld [vmem:[%s2215 + $0x30] sm:$0xff]
                  %2230 = vst [vmem:[%s2216 + $0x30] sm:$0xff] %v2229
                  %v2231 = vld [vmem:[%s2215 + $0x38] sm:$0xff]
                  %2232 = vst [vmem:[%s2216 + $0x38] sm:$0xff] %v2231
                  %v2233 = vld [vmem:[%s2215 + $0x40] sm:$0xff]
                  %2234 = vst [vmem:[%s2216 + $0x40] sm:$0xff] %v2233
                  %v2235 = vld [vmem:[%s2215 + $0x48] sm:$0xff]
                  %2236 = vst [vmem:[%s2216 + $0x48] sm:$0xff] %v2235
                  %v2237 = vld [vmem:[%s2215 + $0x50] sm:$0xff]
                  %2238 = vst [vmem:[%s2216 + $0x50] sm:$0xff] %v2237
                  %v2239 = vld [vmem:[%s2215 + $0x58] sm:$0xff]
                  %2240 = vst [vmem:[%s2216 + $0x58] sm:$0xff] %v2239
                  %v2241 = vld [vmem:[%s2215 + $0x60] sm:$0xff]
                  %2242 = vst [vmem:[%s2216 + $0x60] sm:$0xff] %v2241
                  %v2243 = vld [vmem:[%s2215 + $0x68] sm:$0xff]
                  %2244 = vst [vmem:[%s2216 + $0x68] sm:$0xff] %v2243
                  %v2245 = vld [vmem:[%s2215 + $0x70] sm:$0xff]
                  %2246 = vst [vmem:[%s2216 + $0x70] sm:$0xff] %v2245
                  %v2247 = vld [vmem:[%s2215 + $0x78] sm:$0xff]
                  %2248 = vst [vmem:[%s2216 + $0x78] sm:$0xff] %v2247
                  %v2249 = vld [vmem:[%s2215 + $0x80] sm:$0xff]
                  %2250 = vst [vmem:[%s2216 + $0x80] sm:$0xff] %v2249
                  %v2251 = vld [vmem:[%s2215 + $0x88] sm:$0xff]
                  %2252 = vst [vmem:[%s2216 + $0x88] sm:$0xff] %v2251
                  %v2253 = vld [vmem:[%s2215 + $0x90] sm:$0xff]
                  %2254 = vst [vmem:[%s2216 + $0x90] sm:$0xff] %v2253
                  %v2255 = vld [vmem:[%s2215 + $0x98] sm:$0xff]
                  %2256 = vst [vmem:[%s2216 + $0x98] sm:$0xff] %v2255
                  %v2257 = vld [vmem:[%s2215 + $0xa0] sm:$0xff]
                  %2258 = vst [vmem:[%s2216 + $0xa0] sm:$0xff] %v2257
                  %v2259 = vld [vmem:[%s2215 + $0xa8] sm:$0xff]
                  %2260 = vst [vmem:[%s2216 + $0xa8] sm:$0xff] %v2259
                  %v2261 = vld [vmem:[%s2215 + $0xb0] sm:$0xff]
                  %2262 = vst [vmem:[%s2216 + $0xb0] sm:$0xff] %v2261
                  %v2263 = vld [vmem:[%s2215 + $0xb8] sm:$0xff]
                  %2264 = vst [vmem:[%s2216 + $0xb8] sm:$0xff] %v2263
                  %v2265 = vld [vmem:[%s2215 + $0xc0] sm:$0xff]
                  %2266 = vst [vmem:[%s2216 + $0xc0] sm:$0xff] %v2265
                  %v2267 = vld [vmem:[%s2215 + $0xc8] sm:$0xff]
                  %2268 = vst [vmem:[%s2216 + $0xc8] sm:$0xff] %v2267
                  %v2269 = vld [vmem:[%s2215 + $0xd0] sm:$0xff]
                  %2270 = vst [vmem:[%s2216 + $0xd0] sm:$0xff] %v2269
                  %v2271 = vld [vmem:[%s2215 + $0xd8] sm:$0xff]
                  %2272 = vst [vmem:[%s2216 + $0xd8] sm:$0xff] %v2271
                  %v2273 = vld [vmem:[%s2215 + $0xe0] sm:$0xff]
                  %2274 = vst [vmem:[%s2216 + $0xe0] sm:$0xff] %v2273
                  %v2275 = vld [vmem:[%s2215 + $0xe8] sm:$0xff]
                  %2276 = vst [vmem:[%s2216 + $0xe8] sm:$0xff] %v2275
                  %v2277 = vld [vmem:[%s2215 + $0xf0] sm:$0xff]
                  %2278 = vst [vmem:[%s2216 + $0xf0] sm:$0xff] %v2277
                  %v2279 = vld [vmem:[%s2215 + $0xf8] sm:$0xff]
                  %2280 = vst [vmem:[%s2216 + $0xf8] sm:$0xff] %v2279
                  %v2281 = vld [vmem:[%s2215 + $0x100] sm:$0xff]
                  %2282 = vst [vmem:[%s2216 + $0x100] sm:$0xff] %v2281
                  %v2283 = vld [vmem:[%s2215 + $0x108] sm:$0xff]
                  %2284 = vst [vmem:[%s2216 + $0x108] sm:$0xff] %v2283
                  %v2285 = vld [vmem:[%s2215 + $0x110] sm:$0xff]
                  %2286 = vst [vmem:[%s2216 + $0x110] sm:$0xff] %v2285
                  %v2287 = vld [vmem:[%s2215 + $0x118] sm:$0xff]
                  %2288 = vst [vmem:[%s2216 + $0x118] sm:$0xff] %v2287
                  %v2289 = vld [vmem:[%s2215 + $0x120] sm:$0xff]
                  %2290 = vst [vmem:[%s2216 + $0x120] sm:$0xff] %v2289
                  %v2291 = vld [vmem:[%s2215 + $0x128] sm:$0xff]
                  %2292 = vst [vmem:[%s2216 + $0x128] sm:$0xff] %v2291
                  %v2293 = vld [vmem:[%s2215 + $0x130] sm:$0xff]
                  %2294 = vst [vmem:[%s2216 + $0x130] sm:$0xff] %v2293
                  %v2295 = vld [vmem:[%s2215 + $0x138] sm:$0xff]
                  %2296 = vst [vmem:[%s2216 + $0x138] sm:$0xff] %v2295
                  %v2297 = vld [vmem:[%s2215 + $0x140] sm:$0xff]
                  %2298 = vst [vmem:[%s2216 + $0x140] sm:$0xff] %v2297
                  %v2299 = vld [vmem:[%s2215 + $0x148] sm:$0xff]
                  %2300 = vst [vmem:[%s2216 + $0x148] sm:$0xff] %v2299
                  %v2301 = vld [vmem:[%s2215 + $0x150] sm:$0xff]
                  %2302 = vst [vmem:[%s2216 + $0x150] sm:$0xff] %v2301
                  %v2303 = vld [vmem:[%s2215 + $0x158] sm:$0xff]
                  %2304 = vst [vmem:[%s2216 + $0x158] sm:$0xff] %v2303
                  %v2305 = vld [vmem:[%s2215 + $0x160] sm:$0xff]
                  %2306 = vst [vmem:[%s2216 + $0x160] sm:$0xff] %v2305
                  %v2307 = vld [vmem:[%s2215 + $0x168] sm:$0xff]
                  %2308 = vst [vmem:[%s2216 + $0x168] sm:$0xff] %v2307
                  %v2309 = vld [vmem:[%s2215 + $0x170] sm:$0xff]
                  %2310 = vst [vmem:[%s2216 + $0x170] sm:$0xff] %v2309
                  %v2311 = vld [vmem:[%s2215 + $0x178] sm:$0xff]
                  %2312 = vst [vmem:[%s2216 + $0x178] sm:$0xff] %v2311
                  %v2313 = vld [vmem:[%s2215 + $0x180] sm:$0xff]
                  %2314 = vst [vmem:[%s2216 + $0x180] sm:$0xff] %v2313
                  %v2315 = vld [vmem:[%s2215 + $0x188] sm:$0xff]
                  %2316 = vst [vmem:[%s2216 + $0x188] sm:$0xff] %v2315
                  %v2317 = vld [vmem:[%s2215 + $0x190] sm:$0xff]
                  %2318 = vst [vmem:[%s2216 + $0x190] sm:$0xff] %v2317
                  %v2319 = vld [vmem:[%s2215 + $0x198] sm:$0xff]
                  %2320 = vst [vmem:[%s2216 + $0x198] sm:$0xff] %v2319
                  %v2321 = vld [vmem:[%s2215 + $0x1a0] sm:$0xff]
                  %2322 = vst [vmem:[%s2216 + $0x1a0] sm:$0xff] %v2321
                  %v2323 = vld [vmem:[%s2215 + $0x1a8] sm:$0xff]
                  %2324 = vst [vmem:[%s2216 + $0x1a8] sm:$0xff] %v2323
                  %v2325 = vld [vmem:[%s2215 + $0x1b0] sm:$0xff]
                  %2326 = vst [vmem:[%s2216 + $0x1b0] sm:$0xff] %v2325
                  %v2327 = vld [vmem:[%s2215 + $0x1b8] sm:$0xff]
                  %2328 = vst [vmem:[%s2216 + $0x1b8] sm:$0xff] %v2327
                  %v2329 = vld [vmem:[%s2215 + $0x1c0] sm:$0xff]
                  %2330 = vst [vmem:[%s2216 + $0x1c0] sm:$0xff] %v2329
                  %v2331 = vld [vmem:[%s2215 + $0x1c8] sm:$0xff]
                  %2332 = vst [vmem:[%s2216 + $0x1c8] sm:$0xff] %v2331
                  %v2333 = vld [vmem:[%s2215 + $0x1d0] sm:$0xff]
                  %2334 = vst [vmem:[%s2216 + $0x1d0] sm:$0xff] %v2333
                  %v2335 = vld [vmem:[%s2215 + $0x1d8] sm:$0xff]
                  %2336 = vst [vmem:[%s2216 + $0x1d8] sm:$0xff] %v2335
                  %v2337 = vld [vmem:[%s2215 + $0x1e0] sm:$0xff]
                  %2338 = vst [vmem:[%s2216 + $0x1e0] sm:$0xff] %v2337
                  %v2339 = vld [vmem:[%s2215 + $0x1e8] sm:$0xff]
                  %2340 = vst [vmem:[%s2216 + $0x1e8] sm:$0xff] %v2339
                  %v2341 = vld [vmem:[%s2215 + $0x1f0] sm:$0xff]
                  %2342 = vst [vmem:[%s2216 + $0x1f0] sm:$0xff] %v2341
                  %v2343 = vld [vmem:[%s2215 + $0x1f8] sm:$0xff]
                  %2344 = vst [vmem:[%s2216 + $0x1f8] sm:$0xff] %v2343
                  %s2345 = sadd.s32 1, %s2214
                  %p2346 = scmp.ge.s32.totalorder %s2345, %s2207
                  %s2347 = scalar_select %p2346, 0, %s2345
                  %s2348 = smul.u32 %s2347, 512
                  %s2349 = smul.u32 %s2347, 512
                  %s2350 = scalar_lea.vmem %s2014, %s2348 [#allocation2]
                  %s2351 = scalar_lea.vmem %s2025, %s2349
                $region87: #{tpu_custom_call.1} parent=81 // loop_footer
                  %s2211 = sadd.s32 %s2209, 1
                $region88: #{tpu_custom_call.1} parent=81 // loop_footer_branch
                  %2208 = sbr.rel target = $region84
                $region89: #{tpu_custom_call.1} parent=81 // loop_exit
                  _
                %s2352 = sshrl.u32 %s2021, 6
                %s2353 = sand.u32 %s2021, 63
                %s2354 = smul.u32 %s2352, 64
                %s2355 = smul.u32 8, %s2354
                %s2356 = scalar_lea.vmem %s2014, %s2355 [#allocation2]
                %s2357 = smul.u32 8, %s2354
                %s2358 = scalar_lea.vmem %s2025, %s2357
                // While loop
                $region90: #{tpu_custom_call.1} parent=81 // loop_pre_header
                  _
                $region91: #{tpu_custom_call.1} parent=81 // loop_header
                  %s2360 = sphi 0, %s2362
                  %p2361 = scmp.ge.s32.totalorder %s2360, %s2353
                  %s2365 = sphi 0, %s2372
                  %s2366 = sphi %s2356, %s2375
                  %s2367 = sphi %s2358, %s2376
                $region92: #{tpu_custom_call.1} parent=81 // loop_header_branch
                  %2364 = sbr.rel (%p2361) target = $region96
                $region93: #{tpu_custom_call.1} parent=81 // loop_body
                  %v2368 = vld [vmem:[%s2366] sm:$0xff]
                  %2369 = vst [vmem:[%s2367] sm:$0xff] %v2368
                  %s2370 = sadd.s32 1, %s2365
                  %p2371 = scmp.ge.s32.totalorder %s2370, %s2353
                  %s2372 = scalar_select %p2371, 0, %s2370
                  %s2373 = smul.u32 %s2372, 8
                  %s2374 = smul.u32 %s2372, 8
                  %s2375 = scalar_lea.vmem %s2356, %s2373 [#allocation2]
                  %s2376 = scalar_lea.vmem %s2358, %s2374
                $region94: #{tpu_custom_call.1} parent=81 // loop_footer
                  %s2362 = sadd.s32 %s2360, 1
                $region95: #{tpu_custom_call.1} parent=81 // loop_footer_branch
                  %2359 = sbr.rel target = $region91
                $region96: #{tpu_custom_call.1} parent=81 // loop_exit
                  _
              $region82: #{tpu_custom_call.1} parent=59 // pred_fallthru
                _
              // Predicated region
              $region97: #{tpu_custom_call.1} parent=59 // pred_check
                _
              $region98: #{tpu_custom_call.1} parent=59 // pred_check_branch
                %2378 = sbr.rel target = $region100
              $region99: #{tpu_custom_call.1} parent=59 // pred_region
                _
              $region100: #{tpu_custom_call.1} parent=59 // pred_fallthru
                _
            $region60: #{tpu_custom_call.1} parent=55 // pred_fallthru
              _
            // Predicated region
            $region61: #{tpu_custom_call.1} parent=55 // pred_check
              _
            $region62: #{tpu_custom_call.1} parent=55 // pred_check_branch
              %2032 = sbr.rel target = $region64
            $region63: #{tpu_custom_call.1} parent=55 // pred_region
              %s2034 = ssub.s32 256, 1
              %s2035 = sshrl.u32 %s2021, 6
              // While loop
              $region65: #{tpu_custom_call.1} parent=63 // loop_pre_header
                _
              $region66: #{tpu_custom_call.1} parent=63 // loop_header
                %s2037 = sphi 0, %s2039
                %p2038 = scmp.ge.s32.totalorder %s2037, %s2035
                %s2042 = sphi 0, %s2175
                %s2043 = sphi %s2014, %s2178
                %s2044 = sphi %s2025, %s2179
              $region67: #{tpu_custom_call.1} parent=63 // loop_header_branch
                %2041 = sbr.rel (%p2038) target = $region71
              $region68: #{tpu_custom_call.1} parent=63 // loop_body
                %v2045 = vld [vmem:[%s2043] sm:%s2034]
                %2046 = vst [vmem:[%s2044] sm:%s2034] %v2045
                %v2047 = vld [vmem:[%s2043 + $0x8] sm:%s2034]
                %2048 = vst [vmem:[%s2044 + $0x8] sm:%s2034] %v2047
                %v2049 = vld [vmem:[%s2043 + $0x10] sm:%s2034]
                %2050 = vst [vmem:[%s2044 + $0x10] sm:%s2034] %v2049
                %v2051 = vld [vmem:[%s2043 + $0x18] sm:%s2034]
                %2052 = vst [vmem:[%s2044 + $0x18] sm:%s2034] %v2051
                %v2053 = vld [vmem:[%s2043 + $0x20] sm:%s2034]
                %2054 = vst [vmem:[%s2044 + $0x20] sm:%s2034] %v2053
                %v2055 = vld [vmem:[%s2043 + $0x28] sm:%s2034]
                %2056 = vst [vmem:[%s2044 + $0x28] sm:%s2034] %v2055
                %v2057 = vld [vmem:[%s2043 + $0x30] sm:%s2034]
                %2058 = vst [vmem:[%s2044 + $0x30] sm:%s2034] %v2057
                %v2059 = vld [vmem:[%s2043 + $0x38] sm:%s2034]
                %2060 = vst [vmem:[%s2044 + $0x38] sm:%s2034] %v2059
                %v2061 = vld [vmem:[%s2043 + $0x40] sm:%s2034]
                %2062 = vst [vmem:[%s2044 + $0x40] sm:%s2034] %v2061
                %v2063 = vld [vmem:[%s2043 + $0x48] sm:%s2034]
                %2064 = vst [vmem:[%s2044 + $0x48] sm:%s2034] %v2063
                %v2065 = vld [vmem:[%s2043 + $0x50] sm:%s2034]
                %2066 = vst [vmem:[%s2044 + $0x50] sm:%s2034] %v2065
                %v2067 = vld [vmem:[%s2043 + $0x58] sm:%s2034]
                %2068 = vst [vmem:[%s2044 + $0x58] sm:%s2034] %v2067
                %v2069 = vld [vmem:[%s2043 + $0x60] sm:%s2034]
                %2070 = vst [vmem:[%s2044 + $0x60] sm:%s2034] %v2069
                %v2071 = vld [vmem:[%s2043 + $0x68] sm:%s2034]
                %2072 = vst [vmem:[%s2044 + $0x68] sm:%s2034] %v2071
                %v2073 = vld [vmem:[%s2043 + $0x70] sm:%s2034]
                %2074 = vst [vmem:[%s2044 + $0x70] sm:%s2034] %v2073
                %v2075 = vld [vmem:[%s2043 + $0x78] sm:%s2034]
                %2076 = vst [vmem:[%s2044 + $0x78] sm:%s2034] %v2075
                %v2077 = vld [vmem:[%s2043 + $0x80] sm:%s2034]
                %2078 = vst [vmem:[%s2044 + $0x80] sm:%s2034] %v2077
                %v2079 = vld [vmem:[%s2043 + $0x88] sm:%s2034]
                %2080 = vst [vmem:[%s2044 + $0x88] sm:%s2034] %v2079
                %v2081 = vld [vmem:[%s2043 + $0x90] sm:%s2034]
                %2082 = vst [vmem:[%s2044 + $0x90] sm:%s2034] %v2081
                %v2083 = vld [vmem:[%s2043 + $0x98] sm:%s2034]
                %2084 = vst [vmem:[%s2044 + $0x98] sm:%s2034] %v2083
                %v2085 = vld [vmem:[%s2043 + $0xa0] sm:%s2034]
                %2086 = vst [vmem:[%s2044 + $0xa0] sm:%s2034] %v2085
                %v2087 = vld [vmem:[%s2043 + $0xa8] sm:%s2034]
                %2088 = vst [vmem:[%s2044 + $0xa8] sm:%s2034] %v2087
                %v2089 = vld [vmem:[%s2043 + $0xb0] sm:%s2034]
                %2090 = vst [vmem:[%s2044 + $0xb0] sm:%s2034] %v2089
                %v2091 = vld [vmem:[%s2043 + $0xb8] sm:%s2034]
                %2092 = vst [vmem:[%s2044 + $0xb8] sm:%s2034] %v2091
                %v2093 = vld [vmem:[%s2043 + $0xc0] sm:%s2034]
                %2094 = vst [vmem:[%s2044 + $0xc0] sm:%s2034] %v2093
                %v2095 = vld [vmem:[%s2043 + $0xc8] sm:%s2034]
                %2096 = vst [vmem:[%s2044 + $0xc8] sm:%s2034] %v2095
                %v2097 = vld [vmem:[%s2043 + $0xd0] sm:%s2034]
                %2098 = vst [vmem:[%s2044 + $0xd0] sm:%s2034] %v2097
                %v2099 = vld [vmem:[%s2043 + $0xd8] sm:%s2034]
                %2100 = vst [vmem:[%s2044 + $0xd8] sm:%s2034] %v2099
                %v2101 = vld [vmem:[%s2043 + $0xe0] sm:%s2034]
                %2102 = vst [vmem:[%s2044 + $0xe0] sm:%s2034] %v2101
                %v2103 = vld [vmem:[%s2043 + $0xe8] sm:%s2034]
                %2104 = vst [vmem:[%s2044 + $0xe8] sm:%s2034] %v2103
                %v2105 = vld [vmem:[%s2043 + $0xf0] sm:%s2034]
                %2106 = vst [vmem:[%s2044 + $0xf0] sm:%s2034] %v2105
                %v2107 = vld [vmem:[%s2043 + $0xf8] sm:%s2034]
                %2108 = vst [vmem:[%s2044 + $0xf8] sm:%s2034] %v2107
                %v2109 = vld [vmem:[%s2043 + $0x100] sm:%s2034]
                %2110 = vst [vmem:[%s2044 + $0x100] sm:%s2034] %v2109
                %v2111 = vld [vmem:[%s2043 + $0x108] sm:%s2034]
                %2112 = vst [vmem:[%s2044 + $0x108] sm:%s2034] %v2111
                %v2113 = vld [vmem:[%s2043 + $0x110] sm:%s2034]
                %2114 = vst [vmem:[%s2044 + $0x110] sm:%s2034] %v2113
                %v2115 = vld [vmem:[%s2043 + $0x118] sm:%s2034]
                %2116 = vst [vmem:[%s2044 + $0x118] sm:%s2034] %v2115
                %v2117 = vld [vmem:[%s2043 + $0x120] sm:%s2034]
                %2118 = vst [vmem:[%s2044 + $0x120] sm:%s2034] %v2117
                %v2119 = vld [vmem:[%s2043 + $0x128] sm:%s2034]
                %2120 = vst [vmem:[%s2044 + $0x128] sm:%s2034] %v2119
                %v2121 = vld [vmem:[%s2043 + $0x130] sm:%s2034]
                %2122 = vst [vmem:[%s2044 + $0x130] sm:%s2034] %v2121
                %v2123 = vld [vmem:[%s2043 + $0x138] sm:%s2034]
                %2124 = vst [vmem:[%s2044 + $0x138] sm:%s2034] %v2123
                %v2125 = vld [vmem:[%s2043 + $0x140] sm:%s2034]
                %2126 = vst [vmem:[%s2044 + $0x140] sm:%s2034] %v2125
                %v2127 = vld [vmem:[%s2043 + $0x148] sm:%s2034]
                %2128 = vst [vmem:[%s2044 + $0x148] sm:%s2034] %v2127
                %v2129 = vld [vmem:[%s2043 + $0x150] sm:%s2034]
                %2130 = vst [vmem:[%s2044 + $0x150] sm:%s2034] %v2129
                %v2131 = vld [vmem:[%s2043 + $0x158] sm:%s2034]
                %2132 = vst [vmem:[%s2044 + $0x158] sm:%s2034] %v2131
                %v2133 = vld [vmem:[%s2043 + $0x160] sm:%s2034]
                %2134 = vst [vmem:[%s2044 + $0x160] sm:%s2034] %v2133
                %v2135 = vld [vmem:[%s2043 + $0x168] sm:%s2034]
                %2136 = vst [vmem:[%s2044 + $0x168] sm:%s2034] %v2135
                %v2137 = vld [vmem:[%s2043 + $0x170] sm:%s2034]
                %2138 = vst [vmem:[%s2044 + $0x170] sm:%s2034] %v2137
                %v2139 = vld [vmem:[%s2043 + $0x178] sm:%s2034]
                %2140 = vst [vmem:[%s2044 + $0x178] sm:%s2034] %v2139
                %v2141 = vld [vmem:[%s2043 + $0x180] sm:%s2034]
                %2142 = vst [vmem:[%s2044 + $0x180] sm:%s2034] %v2141
                %v2143 = vld [vmem:[%s2043 + $0x188] sm:%s2034]
                %2144 = vst [vmem:[%s2044 + $0x188] sm:%s2034] %v2143
                %v2145 = vld [vmem:[%s2043 + $0x190] sm:%s2034]
                %2146 = vst [vmem:[%s2044 + $0x190] sm:%s2034] %v2145
                %v2147 = vld [vmem:[%s2043 + $0x198] sm:%s2034]
                %2148 = vst [vmem:[%s2044 + $0x198] sm:%s2034] %v2147
                %v2149 = vld [vmem:[%s2043 + $0x1a0] sm:%s2034]
                %2150 = vst [vmem:[%s2044 + $0x1a0] sm:%s2034] %v2149
                %v2151 = vld [vmem:[%s2043 + $0x1a8] sm:%s2034]
                %2152 = vst [vmem:[%s2044 + $0x1a8] sm:%s2034] %v2151
                %v2153 = vld [vmem:[%s2043 + $0x1b0] sm:%s2034]
                %2154 = vst [vmem:[%s2044 + $0x1b0] sm:%s2034] %v2153
                %v2155 = vld [vmem:[%s2043 + $0x1b8] sm:%s2034]
                %2156 = vst [vmem:[%s2044 + $0x1b8] sm:%s2034] %v2155
                %v2157 = vld [vmem:[%s2043 + $0x1c0] sm:%s2034]
                %2158 = vst [vmem:[%s2044 + $0x1c0] sm:%s2034] %v2157
                %v2159 = vld [vmem:[%s2043 + $0x1c8] sm:%s2034]
                %2160 = vst [vmem:[%s2044 + $0x1c8] sm:%s2034] %v2159
                %v2161 = vld [vmem:[%s2043 + $0x1d0] sm:%s2034]
                %2162 = vst [vmem:[%s2044 + $0x1d0] sm:%s2034] %v2161
                %v2163 = vld [vmem:[%s2043 + $0x1d8] sm:%s2034]
                %2164 = vst [vmem:[%s2044 + $0x1d8] sm:%s2034] %v2163
                %v2165 = vld [vmem:[%s2043 + $0x1e0] sm:%s2034]
                %2166 = vst [vmem:[%s2044 + $0x1e0] sm:%s2034] %v2165
                %v2167 = vld [vmem:[%s2043 + $0x1e8] sm:%s2034]
                %2168 = vst [vmem:[%s2044 + $0x1e8] sm:%s2034] %v2167
                %v2169 = vld [vmem:[%s2043 + $0x1f0] sm:%s2034]
                %2170 = vst [vmem:[%s2044 + $0x1f0] sm:%s2034] %v2169
                %v2171 = vld [vmem:[%s2043 + $0x1f8] sm:%s2034]
                %2172 = vst [vmem:[%s2044 + $0x1f8] sm:%s2034] %v2171
                %s2173 = sadd.s32 1, %s2042
                %p2174 = scmp.ge.s32.totalorder %s2173, %s2035
                %s2175 = scalar_select %p2174, 0, %s2173
                %s2176 = smul.u32 %s2175, 512
                %s2177 = smul.u32 %s2175, 512
                %s2178 = scalar_lea.vmem %s2014, %s2176 [#allocation2]
                %s2179 = scalar_lea.vmem %s2025, %s2177
              $region69: #{tpu_custom_call.1} parent=63 // loop_footer
                %s2039 = sadd.s32 %s2037, 1
              $region70: #{tpu_custom_call.1} parent=63 // loop_footer_branch
                %2036 = sbr.rel target = $region66
              $region71: #{tpu_custom_call.1} parent=63 // loop_exit
                _
              %s2180 = sshrl.u32 %s2021, 6
              %s2181 = sand.u32 %s2021, 63
              %s2182 = smul.u32 %s2180, 64
              %s2183 = smul.u32 8, %s2182
              %s2184 = scalar_lea.vmem %s2014, %s2183 [#allocation2]
              %s2185 = smul.u32 8, %s2182
              %s2186 = scalar_lea.vmem %s2025, %s2185
              // While loop
              $region72: #{tpu_custom_call.1} parent=63 // loop_pre_header
                _
              $region73: #{tpu_custom_call.1} parent=63 // loop_header
                %s2188 = sphi 0, %s2190
                %p2189 = scmp.ge.s32.totalorder %s2188, %s2181
                %s2193 = sphi 0, %s2200
                %s2194 = sphi %s2184, %s2203
                %s2195 = sphi %s2186, %s2204
              $region74: #{tpu_custom_call.1} parent=63 // loop_header_branch
                %2192 = sbr.rel (%p2189) target = $region78
              $region75: #{tpu_custom_call.1} parent=63 // loop_body
                %v2196 = vld [vmem:[%s2194] sm:%s2034]
                %2197 = vst [vmem:[%s2195] sm:%s2034] %v2196
                %s2198 = sadd.s32 1, %s2193
                %p2199 = scmp.ge.s32.totalorder %s2198, %s2181
                %s2200 = scalar_select %p2199, 0, %s2198
                %s2201 = smul.u32 %s2200, 8
                %s2202 = smul.u32 %s2200, 8
                %s2203 = scalar_lea.vmem %s2184, %s2201 [#allocation2]
                %s2204 = scalar_lea.vmem %s2186, %s2202
              $region76: #{tpu_custom_call.1} parent=63 // loop_footer
                %s2190 = sadd.s32 %s2188, 1
              $region77: #{tpu_custom_call.1} parent=63 // loop_footer_branch
                %2187 = sbr.rel target = $region73
              $region78: #{tpu_custom_call.1} parent=63 // loop_exit
                _
            $region64: #{tpu_custom_call.1} parent=55 // pred_fallthru
              _
          $region56: #{tpu_custom_call.1} parent=51 // pred_fallthru
            _
          %2379 = vnop
        $region52: #{tpu_custom_call.1} parent=47 // pred_fallthru
          _
      $region48: #{tpu_custom_call.1} parent=5 // pred_fallthru
        _
      %p2380 = scmp.le.s32.totalorder 2, %s13
      // Predicated region
      $region101: #{tpu_custom_call.1} parent=5 // pred_check
        %p2381 = pneg %p2380
      $region102: #{tpu_custom_call.1} parent=5 // pred_check_branch
        %2383 = sbr.rel (%p2381) target = $region104
      $region103: #{tpu_custom_call.1} parent=5 // pred_region
        %s2384 = ssub.s32 %s13, 2
        // Predicated region
        $region105: #{tpu_custom_call.1} parent=103 // pred_check
          %p2385 = pneg %p194
        $region106: #{tpu_custom_call.1} parent=103 // pred_check_branch
          %2387 = sbr.rel (%p2385) target = $region108
        $region107: #{tpu_custom_call.1} parent=103 // pred_region
          %s2388 = sand.u32 %s179, 1
          %s2389 = sand.u32 %s179, 1
          %s2390 = smul.addr %s2389, 512
          %s2391 = scalar_lea.vmem [#allocation2], %s2390
        $region108: #{tpu_custom_call.1} parent=103 // pred_fallthru
          _
      $region104: #{tpu_custom_call.1} parent=5 // pred_fallthru
        _
    $region6: #{tpu_custom_call.1} parent=1 // loop_footer
      %s17 = sadd.s32 1, %s13
    $region7: #{tpu_custom_call.1} parent=1 // loop_footer_branch
      %12 = sbr.rel target = $region3
    $region8: #{tpu_custom_call.1} parent=1 // loop_exit
      _

</llo_original>
